<compile_context>
chip_gen: v6e
topology: v6e:2x2x1
jax: 0.10.0
libtpu: 0.0.40
codegen_flags: <defaults>
</compile_context>

<pallas_src>
import functools

import jax
import jax.numpy as jnp
from jax import lax
from jax.experimental import pallas as pl
from jax.experimental.pallas import tpu as pltpu


# ---------------------------------------------------------------------------
# Kernel 1: fused 1x1x1 Conv3d projections == one row-tiled matmul pass
#   emitting bf16 q (scale folded in) and bf16 kv = [k | v].
# ---------------------------------------------------------------------------
def _qkv_proj_kernel(x_ref, wq_ref, bq_ref, wkv_ref, bkv_ref, q_ref, kv_ref):
    x = x_ref[...].astype(jnp.bfloat16)                      # bf16 MXU operands
    q = jnp.dot(x, wq_ref[...], preferred_element_type=jnp.float32) + bq_ref[...]
    kv = jnp.dot(x, wkv_ref[...], preferred_element_type=jnp.float32) + bkv_ref[...]
    q_ref[...] = q.astype(q_ref.dtype)
    kv_ref[...] = kv.astype(kv_ref.dtype)


def qkv_proj_pallas(x, wq_bf16, bq, wkv_bf16, bkv, *, row_tile=1024):
    n, c = x.shape
    kf = wq_bf16.shape[1]
    row_tile = min(row_tile, pl.cdiv(n, 8) * 8)
    n_pad = pl.cdiv(n, row_tile) * row_tile
    if n_pad != n:                                           # padded tail rows
        x = jnp.pad(x, ((0, n_pad - n), (0, 0)))
    q, kv = pl.pallas_call(
        _qkv_proj_kernel,
        out_shape=(jax.ShapeDtypeStruct((n_pad, kf), jnp.bfloat16),
                   jax.ShapeDtypeStruct((n_pad, 2 * kf), jnp.bfloat16)),
        grid=(n_pad // row_tile,),
        in_specs=[
            pl.BlockSpec((row_tile, c), lambda i: (i, 0)),
            pl.BlockSpec((c, kf), lambda i: (0, 0)),
            pl.BlockSpec((1, kf), lambda i: (0, 0)),
            pl.BlockSpec((c, 2 * kf), lambda i: (0, 0)),
            pl.BlockSpec((1, 2 * kf), lambda i: (0, 0)),
        ],
        out_specs=(pl.BlockSpec((row_tile, kf), lambda i: (i, 0)),
                   pl.BlockSpec((row_tile, 2 * kf), lambda i: (i, 0))),
        compiler_params=pltpu.CompilerParams(dimension_semantics=("parallel",)),
    )(x, wq_bf16, bq, wkv_bf16, bkv)
    if n_pad != n:
        q, kv = q[:n], kv[:n]
    return q, kv


# ---------------------------------------------------------------------------
# Kernel 2: flash-style global 3-D attention (online softmax).
#   grid = (B, Lp//t, Lp//t); heads split by static lane offsets in-kernel;
#   per-head q slices hoisted to a VMEM scratch at kj == 0.
# ---------------------------------------------------------------------------
def _flash_attn_kernel(q_ref, kv_ref, o_ref, qh_ref, m_ref, l_ref, acc_ref,
                       *, num_heads, dk, kf, tkv, l_valid, needs_mask):
    kj = pl.program_id(2)

    @pl.when(kj == 0)
    def _():
        m_ref[...] = jnp.full_like(m_ref, -jnp.inf)
        l_ref[...] = jnp.zeros_like(l_ref)
        acc_ref[...] = jnp.zeros_like(acc_ref)
        q_blk = q_ref[0]                          # [tq, Kf] bf16, scale folded
        for h in range(num_heads):                # hoisted: once per q tile
            qh_ref[h] = q_blk[:, h * dk:(h + 1) * dk]

    kv_blk = kv_ref[0]                            # [tkv, 2*Kf] bf16: [k | v]

    if needs_mask:                                # static flag (padded L only)
        col = kj * tkv + lax.broadcasted_iota(jnp.int32, (1, tkv), 1)
        invalid = col >= l_valid                  # [1, tkv]

    for h in range(num_heads):                    # static unroll
        k_h = kv_blk[:, h * dk:(h + 1) * dk]
        v_h = kv_blk[:, kf + h * dk:kf + (h + 1) * dk]

        s = lax.dot_general(qh_ref[h], k_h, (((1,), (1,)), ((), ())),
                            preferred_element_type=jnp.float32)   # [tq, tkv]
        if needs_mask:
            s = jnp.where(invalid, -jnp.inf, s)

        m_prev = m_ref[h]
        m_new = jnp.maximum(m_prev, jnp.max(s, axis=-1, keepdims=True))
        alpha = jnp.exp(m_prev - m_new)
        p = jnp.exp(s - m_new)
        l_ref[h] = alpha * l_ref[h] + jnp.sum(p, axis=-1, keepdims=True)
        acc_ref[h] = alpha * acc_ref[h] + jnp.dot(
            p.astype(jnp.bfloat16), v_h, preferred_element_type=jnp.float32)
        m_ref[h] = m_new

    @pl.when(kj == pl.num_programs(2) - 1)
    def _():
        outs = [acc_ref[h] * pl.reciprocal(l_ref[h], approx=True)
                for h in range(num_heads)]
        o_ref[0] = jnp.concatenate(outs, axis=-1).astype(o_ref.dtype)


def attention_pallas(q, kv, *, num_heads, kf, tile=512):
    B, L, _ = q.shape
    dk = kf // num_heads
    t = min(tile, pl.cdiv(L, 8) * 8)              # multiple of 8 sublanes
    Lp = pl.cdiv(L, t) * t
    if Lp != L:                                   # masked tail path
        q = jnp.pad(q, ((0, 0), (0, Lp - L), (0, 0)))
        kv = jnp.pad(kv, ((0, 0), (0, Lp - L), (0, 0)))
    kern = functools.partial(_flash_attn_kernel, num_heads=num_heads, dk=dk,
                             kf=kf, tkv=t, l_valid=L, needs_mask=(Lp != L))
    out = pl.pallas_call(
        kern,
        out_shape=jax.ShapeDtypeStruct((B, Lp, kf), jnp.bfloat16),
        grid=(B, Lp // t, Lp // t),
        in_specs=[
            pl.BlockSpec((1, t, kf), lambda b, qi, kj: (b, qi, 0)),
            pl.BlockSpec((1, t, 2 * kf), lambda b, qi, kj: (b, kj, 0)),
        ],
        out_specs=pl.BlockSpec((1, t, kf), lambda b, qi, kj: (b, qi, 0)),
        scratch_shapes=[
            pltpu.VMEM((num_heads, t, dk), jnp.bfloat16),  # hoisted scaled q
            pltpu.VMEM((num_heads, t, 1), jnp.float32),    # running max m
            pltpu.VMEM((num_heads, t, 1), jnp.float32),    # running sum l
            pltpu.VMEM((num_heads, t, dk), jnp.float32),   # output accumulator
        ],
        compiler_params=pltpu.CompilerParams(
            dimension_semantics=("parallel", "parallel", "arbitrary")),
    )(q, kv)
    return out[:, :L] if Lp != L else out


# ---------------------------------------------------------------------------
# Kernel 3: 3x3x3 Conv3d (padding=1) + bias + residual add, tiled over D in
#   slabs.  The overlapping slab+halo window of the (wrapper-padded) input is
#   fetched by a manual DMA; kh/kw taps are folded into the contraction via
#   in-kernel im2col (3 matmuls with K = 9*Cin).
# ---------------------------------------------------------------------------
def _conv3_res_kernel(a_ref, w_ref, b_ref, res_ref, o_ref, xpad_ref, sem_ref,
                      *, slab, H, W, cin):
    b = pl.program_id(0)
    s = pl.program_id(1)
    d0 = s * slab                                  # first padded plane needed
    cp = pltpu.make_async_copy(a_ref.at[b, pl.ds(d0, slab + 2)], xpad_ref, sem_ref)
    cp.start()
    cp.wait()

    xp = xpad_ref[...]                             # [slab+2, H+2, W+2, cin] bf16
    # im2col: fold the kw then kh taps into the channel (lane) dimension.
    xc1 = jnp.concatenate([xp[:, :, kw:kw + W, :] for kw in range(3)], axis=-1)
    xc2 = jnp.concatenate([xc1[:, kh:kh + H, :, :] for kh in range(3)], axis=-1)

    cout = w_ref.shape[-1]
    y = None
    for kd in range(3):                            # 3 MXU matmuls, K = 9*cin
        patch = xc2[kd:kd + slab].reshape(slab * H * W, 9 * cin)
        t = jnp.dot(patch, w_ref[kd], preferred_element_type=jnp.float32)
        y = t if y is None else y + t
    y = (y + b_ref[...]).reshape(slab, H, W, cout)
    o_ref[0] = (y + res_ref[0]).astype(o_ref.dtype)


def conv3d_res_pallas(a_pad, w_folded_bf16, b, res):
    B, Dp, Hp, Wp, cin = a_pad.shape
    D, H, W = Dp - 2, Hp - 2, Wp - 2
    cout = w_folded_bf16.shape[-1]
    slab = next(s for s in (4, 2, 1) if D % s == 0)   # 4-plane slabs when possible
    kern = functools.partial(_conv3_res_kernel, slab=slab, H=H, W=W, cin=cin)
    return pl.pallas_call(
        kern,
        out_shape=jax.ShapeDtypeStruct((B, D, H, W, cout), res.dtype),
        grid=(B, D // slab),
        in_specs=[
            pl.BlockSpec(memory_space=pl.ANY),            # padded input, in HBM
            pl.BlockSpec((3, 9 * cin, cout), lambda b, s: (0, 0, 0)),
            pl.BlockSpec((1, cout), lambda b, s: (0, 0)),
            pl.BlockSpec((1, slab, H, W, cout), lambda b, s: (b, s, 0, 0, 0)),
        ],
        out_specs=pl.BlockSpec((1, slab, H, W, cout), lambda b, s: (b, s, 0, 0, 0)),
        scratch_shapes=[
            pltpu.VMEM((slab + 2, Hp, Wp, cin), jnp.bfloat16),  # slab + halo
            pltpu.SemaphoreType.DMA(()),
        ],
        compiler_params=pltpu.CompilerParams(
            dimension_semantics=("parallel", "parallel")),
    )(a_pad, w_folded_bf16, b, res)


# ---------------------------------------------------------------------------
# Wrapper: full forward pass of multihead_attention_3d (col=False path).
# ---------------------------------------------------------------------------
def multihead_attention_3d_forward(params, x_ncdhw, *, num_heads, col=False):
    assert not col, "only col=False path implemented (see TODO above)"
    B, C, D, H, W = x_ncdhw.shape
    L = D * H * W
    Kf = params["wq"].shape[1]
    Vf = params["wk"].shape[1]
    Of = params["wt"].shape[-1]
    assert Kf == Vf and Kf % num_heads == 0
    dk = Kf // num_heads
    scale = float(dk) ** (-0.5)

    x_cl = jnp.transpose(x_ncdhw, (0, 2, 3, 4, 1))           # [B, D, H, W, C]
    x_flat = x_cl.reshape(B * L, C)

    # Softmax scale folded into the q projection weights/bias (free, removes
    # per-kj VPU work in attention).  kv = [k | v] in lanes, both bf16.
    wq = (params["wq"] * scale).astype(jnp.bfloat16)
    bq = (params["bq"] * scale)[None, :].astype(jnp.float32)
    wkv = jnp.concatenate([params["wk"], params["wv"]], axis=1).astype(jnp.bfloat16)
    bkv = jnp.concatenate([params["bk"], params["bv"]])[None, :].astype(jnp.float32)

    q, kv = qkv_proj_pallas(x_flat, wq, bq, wkv, bkv)        # bf16 [N,Kf], [N,2Kf]
    q = q.reshape(B, L, Kf)                                  # free reshapes
    kv = kv.reshape(B, L, 2 * Kf)

    # Flash attention; output is the merged-heads map [B, L, Kf] in bf16.
    attn = attention_pallas(q, kv, num_heads=num_heads, kf=Kf)
    a = attn.reshape(B, D, H, W, Kf)

    # TODO(synk): fold the halo into the conv kernel's DMA to drop this extra
    # HBM round trip of the bf16 feature map.
    a_pad = jnp.pad(a, ((0, 0), (1, 1), (1, 1), (1, 1), (0, 0)))

    # 3x3x3 conv weights folded to [kd, (kh,kw,cin), cout] for K=9*Cin matmuls.
    # NOTE: the (kh, kw, cin) ordering must match the kernel's im2col concat
    # order (kw innermost-of-the-taps, cin innermost overall).
    w_folded = params["wt"].reshape(3, 9 * Vf, Of).astype(jnp.bfloat16)
    out_cl = conv3d_res_pallas(a_pad, w_folded,
                               params["bt"][None, :].astype(jnp.float32), x_cl)
    return jnp.transpose(out_cl, (0, 4, 1, 2, 3))            # back to NCDHW


# ---------------------------------------------------------------------------
# Pure-JAX f32 reference (for correctness check only).
# ---------------------------------------------------------------------------
def reference_forward(params, x_ncdhw, *, num_heads):
    B, C, D, H, W = x_ncdhw.shape
    L = D * H * W
    x_cl = jnp.transpose(x_ncdhw, (0, 2, 3, 4, 1)).astype(jnp.float32)

    def pconv(w, b):
        return jnp.einsum("bdhwc,cf->bdhwf", x_cl, w) + b

    q = pconv(params["wq"], params["bq"])
    v = pconv(params["wv"], params["bv"])
    k = pconv(params["wk"], params["bk"])
    Kf = q.shape[-1]
    dk = Kf // num_heads

    def sh(t):
        f = t.shape[-1]
        return t.reshape(B, L, num_heads, f // num_heads).transpose(0, 2, 1, 3)

    qh, kh, vh = sh(q), sh(k), sh(v)
    qh = qh * dk ** (-0.5)
    logits = jnp.einsum("bhld,bhmd->bhlm", qh, kh)
    wts = jax.nn.softmax(logits, axis=-1)
    o = jnp.einsum("bhlm,bhmd->bhld", wts, vh)
    a = o.transpose(0, 2, 1, 3).reshape(B, D, H, W, num_heads * dk)

    wt = params["wt"].reshape(3, 3, 3, params["wt"].shape[1], params["wt"].shape[2])
    y = lax.conv_general_dilated(
        a, wt, window_strides=(1, 1, 1), padding="SAME",
        dimension_numbers=("NDHWC", "DHWIO", "NDHWC"),
    ) + params["bt"]
    out = y + x_cl
    return jnp.transpose(out, (0, 4, 1, 2, 3))


if __name__ == "__main__":
    # Small shapes consistent with the module: channels = total_key_filters =
    # total_value_filters = output_filters (required for the residual / transf
    # conv to be shape-consistent in the original PyTorch code).
    B, C, D, H, W = 2, 32, 8, 8, 8
    num_heads = 4
    Kf = Vf = Of = C

    key = jax.random.PRNGKey(0)
    ks = jax.random.split(key, 9)
    params = dict(
        # 1x1x1 conv weights stored as [Cin, Cout] (transposed from PyTorch's
        # [Cout, Cin, 1, 1, 1]); identical math.
        wq=jax.random.normal(ks[0], (C, Kf), jnp.float32) * 0.05,
        bq=jax.random.normal(ks[1], (Kf,), jnp.float32) * 0.01,
        wv=jax.random.normal(ks[2], (C, Kf), jnp.float32) * 0.05,
        bv=jax.random.normal(ks[3], (Kf,), jnp.float32) * 0.01,
        wk=jax.random.normal(ks[4], (C, Vf), jnp.float32) * 0.05,
        bk=jax.random.normal(ks[5], (Vf,), jnp.float32) * 0.01,
        # 3x3x3 conv weights stored as [27, Cin, Cout] in (kd, kh, kw) order
        # (== PyTorch [Cout, Cin, 3, 3, 3] transposed to [3,3,3,Cin,Cout]).
        wt=jax.random.normal(ks[6], (27, Vf, Of), jnp.float32) * 0.05,
        bt=jax.random.normal(ks[7], (Of,), jnp.float32) * 0.01,
    )
    x = jax.random.normal(ks[8], (B, C, D, H, W), jnp.float32)

    out = multihead_attention_3d_forward(params, x, num_heads=num_heads, col=False)
    out = jax.block_until_ready(out)

    ref = reference_forward(params, x, num_heads=num_heads)
    assert out.shape == x.shape
    # bf16 MXU operands / bf16 intermediate streams (f32 accumulation) vs. the
    # all-f32 reference.
    err = float(jnp.max(jnp.abs(out - ref)))
    if err > 5e-2:
        raise RuntimeError(f"mismatch vs reference: max abs err = {err}")
    print("KERNEL_OK")
</pallas_src>

<mosaic_0001>
module attributes {stable_mosaic.version = 11 : i64} {
  func.func @_qkv_proj_kernel(%arg0: i32, %arg1: memref<1024x32xf32, #tpu.memory_space<vmem>>, %arg2: memref<32x32xbf16, #tpu.memory_space<vmem>>, %arg3: memref<1x32xf32, #tpu.memory_space<vmem>>, %arg4: memref<32x64xbf16, #tpu.memory_space<vmem>>, %arg5: memref<1x64xf32, #tpu.memory_space<vmem>>, %arg6: memref<1024x32xbf16, #tpu.memory_space<vmem>>, %arg7: memref<1024x64xbf16, #tpu.memory_space<vmem>>) attributes {dimension_semantics = [#tpu.dimension_semantics<parallel>], iteration_bounds = array<i64: 1>, scalar_prefetch = 0 : i64, scratch_operands = 0 : i64, tpu.core_type = #tpu.core_type<tc>, window_params = [{transform_indices = @transform_0, window_bounds = array<i64: 1024, 32>}, {pipeline_mode = #tpu.pipeline_mode<synchronous>, transform_indices = @transform_1, window_bounds = array<i64: 32, 32>}, {pipeline_mode = #tpu.pipeline_mode<synchronous>, transform_indices = @transform_2, window_bounds = array<i64: 1, 32>}, {pipeline_mode = #tpu.pipeline_mode<synchronous>, transform_indices = @transform_3, window_bounds = array<i64: 32, 64>}, {pipeline_mode = #tpu.pipeline_mode<synchronous>, transform_indices = @transform_4, window_bounds = array<i64: 1, 64>}, {transform_indices = @transform_5, window_bounds = array<i64: 1024, 32>}, {transform_indices = @transform_6, window_bounds = array<i64: 1024, 64>}]} {
    %c0 = arith.constant 0 : index
    %c0_0 = arith.constant 0 : index
    %0 = vector.load %arg1[%c0, %c0_0] : memref<1024x32xf32, #tpu.memory_space<vmem>>, vector<1024x32xf32>
    %1 = arith.truncf %0 : vector<1024x32xf32> to vector<1024x32xbf16>
    %c0_1 = arith.constant 0 : index
    %c0_2 = arith.constant 0 : index
    %2 = vector.load %arg2[%c0_1, %c0_2] : memref<32x32xbf16, #tpu.memory_space<vmem>>, vector<32x32xbf16>
    %cst = arith.constant dense<0.000000e+00> : vector<1024x32xf32>
    %3 = tpu.matmul %1, %2, %cst {dimension_numbers = #tpu.dot_dimension_numbers<[1], [0], [0], [1], [0, 0, 1, 1], [], []>} : vector<1024x32xbf16>, vector<32x32xbf16>, vector<1024x32xf32> -> vector<1024x32xf32>
    %c0_3 = arith.constant 0 : index
    %c0_4 = arith.constant 0 : index
    %4 = vector.load %arg3[%c0_3, %c0_4] : memref<1x32xf32, #tpu.memory_space<vmem>>, vector<1x32xf32>
    %5 = vector.broadcast %4 : vector<1x32xf32> to vector<1024x32xf32>
    %6 = arith.addf %3, %5 : vector<1024x32xf32>
    %c0_5 = arith.constant 0 : index
    %c0_6 = arith.constant 0 : index
    %7 = vector.load %arg4[%c0_5, %c0_6] : memref<32x64xbf16, #tpu.memory_space<vmem>>, vector<32x64xbf16>
    %cst_7 = arith.constant dense<0.000000e+00> : vector<1024x64xf32>
    %8 = tpu.matmul %1, %7, %cst_7 {dimension_numbers = #tpu.dot_dimension_numbers<[1], [0], [0], [1], [0, 0, 1, 1], [], []>} : vector<1024x32xbf16>, vector<32x64xbf16>, vector<1024x64xf32> -> vector<1024x64xf32>
    %c0_8 = arith.constant 0 : index
    %c0_9 = arith.constant 0 : index
    %9 = vector.load %arg5[%c0_8, %c0_9] : memref<1x64xf32, #tpu.memory_space<vmem>>, vector<1x64xf32>
    %10 = vector.broadcast %9 : vector<1x64xf32> to vector<1024x64xf32>
    %11 = arith.addf %8, %10 : vector<1024x64xf32>
    %12 = arith.truncf %6 : vector<1024x32xf32> to vector<1024x32xbf16>
    %c0_10 = arith.constant 0 : index
    %c0_11 = arith.constant 0 : index
    %13 = vector.load %arg6[%c0_10, %c0_11] : memref<1024x32xbf16, #tpu.memory_space<vmem>>, vector<1024x32xbf16>
    tpu.vector_store %arg6[%c0_10, %c0_11], %12 {strides = array<i32>} : memref<1024x32xbf16, #tpu.memory_space<vmem>>, vector<1024x32xbf16>,
    %14 = arith.truncf %11 : vector<1024x64xf32> to vector<1024x64xbf16>
    %c0_12 = arith.constant 0 : index
    %c0_13 = arith.constant 0 : index
    %15 = vector.load %arg7[%c0_12, %c0_13] : memref<1024x64xbf16, #tpu.memory_space<vmem>>, vector<1024x64xbf16>
    tpu.vector_store %arg7[%c0_12, %c0_13], %14 {strides = array<i32>} : memref<1024x64xbf16, #tpu.memory_space<vmem>>, vector<1024x64xbf16>,
    return
  }
  func.func @transform_0(%arg0: i32) -> (i32, i32) {
    %c0_i32 = arith.constant 0 : i32
    %c0_i32_0 = arith.constant 0 : i32
    return %arg0, %c0_i32 : i32, i32
  }
  func.func @transform_1(%arg0: i32) -> (i32, i32) {
    %c0_i32 = arith.constant 0 : i32
    %c0_i32_0 = arith.constant 0 : i32
    %c0_i32_1 = arith.constant 0 : i32
    return %c0_i32, %c0_i32_0 : i32, i32
  }
  func.func @transform_2(%arg0: i32) -> (i32, i32) {
    %c0_i32 = arith.constant 0 : i32
    %c0_i32_0 = arith.constant 0 : i32
    %c0_i32_1 = arith.constant 0 : i32
    return %c0_i32, %c0_i32_0 : i32, i32
  }
  func.func @transform_3(%arg0: i32) -> (i32, i32) {
    %c0_i32 = arith.constant 0 : i32
    %c0_i32_0 = arith.constant 0 : i32
    %c0_i32_1 = arith.constant 0 : i32
    return %c0_i32, %c0_i32_0 : i32, i32
  }
  func.func @transform_4(%arg0: i32) -> (i32, i32) {
    %c0_i32 = arith.constant 0 : i32
    %c0_i32_0 = arith.constant 0 : i32
    %c0_i32_1 = arith.constant 0 : i32
    return %c0_i32, %c0_i32_0 : i32, i32
  }
  func.func @transform_5(%arg0: i32) -> (i32, i32) {
    %c0_i32 = arith.constant 0 : i32
    %c0_i32_0 = arith.constant 0 : i32
    return %arg0, %c0_i32 : i32, i32
  }
  func.func @transform_6(%arg0: i32) -> (i32, i32) {
    %c0_i32 = arith.constant 0 : i32
    %c0_i32_0 = arith.constant 0 : i32
    return %arg0, %c0_i32 : i32, i32
  }
}

</mosaic_0001>

<llo_original>
// kernel: tpu_custom_call.1
$region0: #{tpu_custom_call.1}
  #allocation0 [shape = 'u32[]', space=smem, size = 0x4, offset = 0x4, fixed_abs, tag = 'smem constant byte address 0x4 - core index']
  #allocation1 [shape = 'u32[144,128]{1,0:T(1,128)}', space=vmem, size = 0x12000, scoped, tag = 'internal scratch']
  %s0 = inlined_call_operand.vmem [shape: f32[1024,32], index: 0, kind: input, shape index: {}]
  %s1 = inlined_call_operand.vmem [shape: bf16[32,32], index: 1, kind: input, shape index: {}]
  %s2 = inlined_call_operand.vmem [shape: f32[1,32], index: 2, kind: input, shape index: {}]
  %s3 = inlined_call_operand.vmem [shape: bf16[32,64], index: 3, kind: input, shape index: {}]
  %s4 = inlined_call_operand.vmem [shape: f32[1,64], index: 4, kind: input, shape index: {}]
  %s5 = inlined_call_operand.vmem [shape: bf16[1024,32], index: 5, kind: output, shape index: {0}]
  %s6 = inlined_call_operand.vmem [shape: bf16[1024,64], index: 6, kind: output, shape index: {1}]
  %7 = xla_tuple %s5, %s6
  %s8 = sld [smem:[#allocation0]]
  $region38: #{tpu_custom_call.1} parent=0
    _
  %s10 = ssub.s32 1, %s8
  %s11 = scalar_select 0, %s10, %s8
  // Predicated region
  $region2: #{tpu_custom_call.1} parent=0 // pred_check
    _
  $region3: #{tpu_custom_call.1} parent=0 // pred_check_branch
    %13 = sbr.rel (0) target = $region5
  $region4: #{tpu_custom_call.1} parent=0 // pred_region
    _
  $region5: #{tpu_custom_call.1} parent=0 // pred_fallthru
    _
  // Predicated region
  $region6: #{tpu_custom_call.1} parent=0 // pred_check
    _
  $region7: #{tpu_custom_call.1} parent=0 // pred_check_branch
    %15 = sbr.rel (0) target = $region9
  $region8: #{tpu_custom_call.1} parent=0 // pred_region
    _
  $region9: #{tpu_custom_call.1} parent=0 // pred_fallthru
    _
  // Predicated region
  $region10: #{tpu_custom_call.1} parent=0 // pred_check
    _
  $region11: #{tpu_custom_call.1} parent=0 // pred_check_branch
    %17 = sbr.rel (0) target = $region13
  $region12: #{tpu_custom_call.1} parent=0 // pred_region
    _
  $region13: #{tpu_custom_call.1} parent=0 // pred_fallthru
    _
  // Predicated region
  $region14: #{tpu_custom_call.1} parent=0 // pred_check
    _
  $region15: #{tpu_custom_call.1} parent=0 // pred_check_branch
    %19 = sbr.rel (0) target = $region17
  $region16: #{tpu_custom_call.1} parent=0 // pred_region
    _
  $region17: #{tpu_custom_call.1} parent=0 // pred_fallthru
    _
  // Predicated region
  $region18: #{tpu_custom_call.1} parent=0 // pred_check
    _
  $region19: #{tpu_custom_call.1} parent=0 // pred_check_branch
    %21 = sbr.rel (0) target = $region21
  $region20: #{tpu_custom_call.1} parent=0 // pred_region
    _
  $region21: #{tpu_custom_call.1} parent=0 // pred_fallthru
    _
  %v23 = vld [vmem:[%s0] sm:$0xff]
  %v24 = vld [vmem:[%s0 + $0x8] sm:$0xff]
  %v25 = vld [vmem:[%s0 + $0x10] sm:$0xff]
  %v26 = vld [vmem:[%s0 + $0x18] sm:$0xff]
  %v27 = vld [vmem:[%s0 + $0x20] sm:$0xff]
  %v28 = vld [vmem:[%s0 + $0x28] sm:$0xff]
  %v29 = vld [vmem:[%s0 + $0x30] sm:$0xff]
  %v30 = vld [vmem:[%s0 + $0x38] sm:$0xff]
  %v31 = vld [vmem:[%s0 + $0x40] sm:$0xff]
  %v32 = vld [vmem:[%s0 + $0x48] sm:$0xff]
  %v33 = vld [vmem:[%s0 + $0x50] sm:$0xff]
  %v34 = vld [vmem:[%s0 + $0x58] sm:$0xff]
  %v35 = vld [vmem:[%s0 + $0x60] sm:$0xff]
  %v36 = vld [vmem:[%s0 + $0x68] sm:$0xff]
  %v37 = vld [vmem:[%s0 + $0x70] sm:$0xff]
  %v38 = vld [vmem:[%s0 + $0x78] sm:$0xff]
  %v39 = vld [vmem:[%s0 + $0x80] sm:$0xff]
  %v40 = vld [vmem:[%s0 + $0x88] sm:$0xff]
  %v41 = vld [vmem:[%s0 + $0x90] sm:$0xff]
  %v42 = vld [vmem:[%s0 + $0x98] sm:$0xff]
  %v43 = vld [vmem:[%s0 + $0xa0] sm:$0xff]
  %v44 = vld [vmem:[%s0 + $0xa8] sm:$0xff]
  %v45 = vld [vmem:[%s0 + $0xb0] sm:$0xff]
  %v46 = vld [vmem:[%s0 + $0xb8] sm:$0xff]
  %v47 = vld [vmem:[%s0 + $0xc0] sm:$0xff]
  %v48 = vld [vmem:[%s0 + $0xc8] sm:$0xff]
  %v49 = vld [vmem:[%s0 + $0xd0] sm:$0xff]
  %v50 = vld [vmem:[%s0 + $0xd8] sm:$0xff]
  %v51 = vld [vmem:[%s0 + $0xe0] sm:$0xff]
  %v52 = vld [vmem:[%s0 + $0xe8] sm:$0xff]
  %v53 = vld [vmem:[%s0 + $0xf0] sm:$0xff]
  %v54 = vld [vmem:[%s0 + $0xf8] sm:$0xff]
  %v55 = vld [vmem:[%s0 + $0x100] sm:$0xff]
  %v56 = vld [vmem:[%s0 + $0x108] sm:$0xff]
  %v57 = vld [vmem:[%s0 + $0x110] sm:$0xff]
  %v58 = vld [vmem:[%s0 + $0x118] sm:$0xff]
  %v59 = vld [vmem:[%s0 + $0x120] sm:$0xff]
  %v60 = vld [vmem:[%s0 + $0x128] sm:$0xff]
  %v61 = vld [vmem:[%s0 + $0x130] sm:$0xff]
  %v62 = vld [vmem:[%s0 + $0x138] sm:$0xff]
  %v63 = vld [vmem:[%s0 + $0x140] sm:$0xff]
  %v64 = vld [vmem:[%s0 + $0x148] sm:$0xff]
  %v65 = vld [vmem:[%s0 + $0x150] sm:$0xff]
  %v66 = vld [vmem:[%s0 + $0x158] sm:$0xff]
  %v67 = vld [vmem:[%s0 + $0x160] sm:$0xff]
  %v68 = vld [vmem:[%s0 + $0x168] sm:$0xff]
  %v69 = vld [vmem:[%s0 + $0x170] sm:$0xff]
  %v70 = vld [vmem:[%s0 + $0x178] sm:$0xff]
  %v71 = vld [vmem:[%s0 + $0x180] sm:$0xff]
  %v72 = vld [vmem:[%s0 + $0x188] sm:$0xff]
  %v73 = vld [vmem:[%s0 + $0x190] sm:$0xff]
  %v74 = vld [vmem:[%s0 + $0x198] sm:$0xff]
  %v75 = vld [vmem:[%s0 + $0x1a0] sm:$0xff]
  %v76 = vld [vmem:[%s0 + $0x1a8] sm:$0xff]
  %v77 = vld [vmem:[%s0 + $0x1b0] sm:$0xff]
  %v78 = vld [vmem:[%s0 + $0x1b8] sm:$0xff]
  %v79 = vld [vmem:[%s0 + $0x1c0] sm:$0xff]
  %v80 = vld [vmem:[%s0 + $0x1c8] sm:$0xff]
  %v81 = vld [vmem:[%s0 + $0x1d0] sm:$0xff]
  %v82 = vld [vmem:[%s0 + $0x1d8] sm:$0xff]
  %v83 = vld [vmem:[%s0 + $0x1e0] sm:$0xff]
  %v84 = vld [vmem:[%s0 + $0x1e8] sm:$0xff]
  %v85 = vld [vmem:[%s0 + $0x1f0] sm:$0xff]
  %v86 = vld [vmem:[%s0 + $0x1f8] sm:$0xff]
  %v87 = vld [vmem:[%s0 + $0x200] sm:$0xff]
  %v88 = vld [vmem:[%s0 + $0x208] sm:$0xff]
  %v89 = vld [vmem:[%s0 + $0x210] sm:$0xff]
  %v90 = vld [vmem:[%s0 + $0x218] sm:$0xff]
  %v91 = vld [vmem:[%s0 + $0x220] sm:$0xff]
  %v92 = vld [vmem:[%s0 + $0x228] sm:$0xff]
  %v93 = vld [vmem:[%s0 + $0x230] sm:$0xff]
  %v94 = vld [vmem:[%s0 + $0x238] sm:$0xff]
  %v95 = vld [vmem:[%s0 + $0x240] sm:$0xff]
  %v96 = vld [vmem:[%s0 + $0x248] sm:$0xff]
  %v97 = vld [vmem:[%s0 + $0x250] sm:$0xff]
  %v98 = vld [vmem:[%s0 + $0x258] sm:$0xff]
  %v99 = vld [vmem:[%s0 + $0x260] sm:$0xff]
  %v100 = vld [vmem:[%s0 + $0x268] sm:$0xff]
  %v101 = vld [vmem:[%s0 + $0x270] sm:$0xff]
  %v102 = vld [vmem:[%s0 + $0x278] sm:$0xff]
  %v103 = vld [vmem:[%s0 + $0x280] sm:$0xff]
  %v104 = vld [vmem:[%s0 + $0x288] sm:$0xff]
  %v105 = vld [vmem:[%s0 + $0x290] sm:$0xff]
  %v106 = vld [vmem:[%s0 + $0x298] sm:$0xff]
  %v107 = vld [vmem:[%s0 + $0x2a0] sm:$0xff]
  %v108 = vld [vmem:[%s0 + $0x2a8] sm:$0xff]
  %v109 = vld [vmem:[%s0 + $0x2b0] sm:$0xff]
  %v110 = vld [vmem:[%s0 + $0x2b8] sm:$0xff]
  %v111 = vld [vmem:[%s0 + $0x2c0] sm:$0xff]
  %v112 = vld [vmem:[%s0 + $0x2c8] sm:$0xff]
  %v113 = vld [vmem:[%s0 + $0x2d0] sm:$0xff]
  %v114 = vld [vmem:[%s0 + $0x2d8] sm:$0xff]
  %v115 = vld [vmem:[%s0 + $0x2e0] sm:$0xff]
  %v116 = vld [vmem:[%s0 + $0x2e8] sm:$0xff]
  %v117 = vld [vmem:[%s0 + $0x2f0] sm:$0xff]
  %v118 = vld [vmem:[%s0 + $0x2f8] sm:$0xff]
  %v119 = vld [vmem:[%s0 + $0x300] sm:$0xff]
  %v120 = vld [vmem:[%s0 + $0x308] sm:$0xff]
  %v121 = vld [vmem:[%s0 + $0x310] sm:$0xff]
  %v122 = vld [vmem:[%s0 + $0x318] sm:$0xff]
  %v123 = vld [vmem:[%s0 + $0x320] sm:$0xff]
  %v124 = vld [vmem:[%s0 + $0x328] sm:$0xff]
  %v125 = vld [vmem:[%s0 + $0x330] sm:$0xff]
  %v126 = vld [vmem:[%s0 + $0x338] sm:$0xff]
  %v127 = vld [vmem:[%s0 + $0x340] sm:$0xff]
  %v128 = vld [vmem:[%s0 + $0x348] sm:$0xff]
  %v129 = vld [vmem:[%s0 + $0x350] sm:$0xff]
  %v130 = vld [vmem:[%s0 + $0x358] sm:$0xff]
  %v131 = vld [vmem:[%s0 + $0x360] sm:$0xff]
  %v132 = vld [vmem:[%s0 + $0x368] sm:$0xff]
  %v133 = vld [vmem:[%s0 + $0x370] sm:$0xff]
  %v134 = vld [vmem:[%s0 + $0x378] sm:$0xff]
  %v135 = vld [vmem:[%s0 + $0x380] sm:$0xff]
  %v136 = vld [vmem:[%s0 + $0x388] sm:$0xff]
  %v137 = vld [vmem:[%s0 + $0x390] sm:$0xff]
  %v138 = vld [vmem:[%s0 + $0x398] sm:$0xff]
  %v139 = vld [vmem:[%s0 + $0x3a0] sm:$0xff]
  %v140 = vld [vmem:[%s0 + $0x3a8] sm:$0xff]
  %v141 = vld [vmem:[%s0 + $0x3b0] sm:$0xff]
  %v142 = vld [vmem:[%s0 + $0x3b8] sm:$0xff]
  %v143 = vld [vmem:[%s0 + $0x3c0] sm:$0xff]
  %v144 = vld [vmem:[%s0 + $0x3c8] sm:$0xff]
  %v145 = vld [vmem:[%s0 + $0x3d0] sm:$0xff]
  %v146 = vld [vmem:[%s0 + $0x3d8] sm:$0xff]
  %v147 = vld [vmem:[%s0 + $0x3e0] sm:$0xff]
  %v148 = vld [vmem:[%s0 + $0x3e8] sm:$0xff]
  %v149 = vld [vmem:[%s0 + $0x3f0] sm:$0xff]
  %v150 = vld [vmem:[%s0 + $0x3f8] sm:$0xff]
  %v151 = vpack.c.bf16 %v24, %v23
  %v152 = vpack.c.bf16 %v26, %v25
  %v153 = vpack.c.bf16 %v28, %v27
  %v154 = vpack.c.bf16 %v30, %v29
  %v155 = vpack.c.bf16 %v32, %v31
  %v156 = vpack.c.bf16 %v34, %v33
  %v157 = vpack.c.bf16 %v36, %v35
  %v158 = vpack.c.bf16 %v38, %v37
  %v159 = vpack.c.bf16 %v40, %v39
  %v160 = vpack.c.bf16 %v42, %v41
  %v161 = vpack.c.bf16 %v44, %v43
  %v162 = vpack.c.bf16 %v46, %v45
  %v163 = vpack.c.bf16 %v48, %v47
  %v164 = vpack.c.bf16 %v50, %v49
  %v165 = vpack.c.bf16 %v52, %v51
  %v166 = vpack.c.bf16 %v54, %v53
  %v167 = vpack.c.bf16 %v56, %v55
  %v168 = vpack.c.bf16 %v58, %v57
  %v169 = vpack.c.bf16 %v60, %v59
  %v170 = vpack.c.bf16 %v62, %v61
  %v171 = vpack.c.bf16 %v64, %v63
  %v172 = vpack.c.bf16 %v66, %v65
  %v173 = vpack.c.bf16 %v68, %v67
  %v174 = vpack.c.bf16 %v70, %v69
  %v175 = vpack.c.bf16 %v72, %v71
  %v176 = vpack.c.bf16 %v74, %v73
  %v177 = vpack.c.bf16 %v76, %v75
  %v178 = vpack.c.bf16 %v78, %v77
  %v179 = vpack.c.bf16 %v80, %v79
  %v180 = vpack.c.bf16 %v82, %v81
  %v181 = vpack.c.bf16 %v84, %v83
  %v182 = vpack.c.bf16 %v86, %v85
  %v183 = vpack.c.bf16 %v88, %v87
  %v184 = vpack.c.bf16 %v90, %v89
  %v185 = vpack.c.bf16 %v92, %v91
  %v186 = vpack.c.bf16 %v94, %v93
  %v187 = vpack.c.bf16 %v96, %v95
  %v188 = vpack.c.bf16 %v98, %v97
  %v189 = vpack.c.bf16 %v100, %v99
  %v190 = vpack.c.bf16 %v102, %v101
  %v191 = vpack.c.bf16 %v104, %v103
  %v192 = vpack.c.bf16 %v106, %v105
  %v193 = vpack.c.bf16 %v108, %v107
  %v194 = vpack.c.bf16 %v110, %v109
  %v195 = vpack.c.bf16 %v112, %v111
  %v196 = vpack.c.bf16 %v114, %v113
  %v197 = vpack.c.bf16 %v116, %v115
  %v198 = vpack.c.bf16 %v118, %v117
  %v199 = vpack.c.bf16 %v120, %v119
  %v200 = vpack.c.bf16 %v122, %v121
  %v201 = vpack.c.bf16 %v124, %v123
  %v202 = vpack.c.bf16 %v126, %v125
  %v203 = vpack.c.bf16 %v128, %v127
  %v204 = vpack.c.bf16 %v130, %v129
  %v205 = vpack.c.bf16 %v132, %v131
  %v206 = vpack.c.bf16 %v134, %v133
  %v207 = vpack.c.bf16 %v136, %v135
  %v208 = vpack.c.bf16 %v138, %v137
  %v209 = vpack.c.bf16 %v140, %v139
  %v210 = vpack.c.bf16 %v142, %v141
  %v211 = vpack.c.bf16 %v144, %v143
  %v212 = vpack.c.bf16 %v146, %v145
  %v213 = vpack.c.bf16 %v148, %v147
  %v214 = vpack.c.bf16 %v150, %v149
  %v215 = vld [vmem:[%s1] sm:$0xf]
  %v216 = vld [vmem:[%s1 + $0x4] sm:$0xf]
  %v217 = vld [vmem:[%s1 + $0x8] sm:$0xf]
  %v218 = vld [vmem:[%s1 + $0xc] sm:$0xf]
  %v219 = vld [vmem:[%s2] sm:$0x1]
  %v221 = vlaneseq
  %v222 = vshrl.u32 %v221, 7
  %v223 = vsub.s32 0, %v222
  %v224 = vrot.slane %v219, %v223
  %v230 = vunpack.c.l.b16 %v215
  %v231 = vunpack.c.l.b16 %v216
  %v232 = vunpack.c.l.b16 %v217
  %v233 = vunpack.c.l.b16 %v218
  %v234 = vpack.c.b16 %v231, %v230
  %v235 = vpack.c.b16 %v233, %v232
  %vm238 = vcmask 261120
  %v240 = vsel %vm238, %v151, 0
  %v243 = vsel %vm238, %v152, 0
  %v246 = vsel %vm238, %v153, 0
  %v249 = vsel %vm238, %v154, 0
  %v252 = vsel %vm238, %v155, 0
  %v255 = vsel %vm238, %v156, 0
  %v258 = vsel %vm238, %v157, 0
  %v261 = vsel %vm238, %v158, 0
  %v264 = vsel %vm238, %v159, 0
  %v267 = vsel %vm238, %v160, 0
  %v270 = vsel %vm238, %v161, 0
  %v273 = vsel %vm238, %v162, 0
  %v276 = vsel %vm238, %v163, 0
  %v279 = vsel %vm238, %v164, 0
  %v282 = vsel %vm238, %v165, 0
  %v285 = vsel %vm238, %v166, 0
  %v288 = vsel %vm238, %v167, 0
  %v291 = vsel %vm238, %v168, 0
  %v294 = vsel %vm238, %v169, 0
  %v297 = vsel %vm238, %v170, 0
  %v300 = vsel %vm238, %v171, 0
  %v303 = vsel %vm238, %v172, 0
  %v306 = vsel %vm238, %v173, 0
  %v309 = vsel %vm238, %v174, 0
  %v312 = vsel %vm238, %v175, 0
  %v315 = vsel %vm238, %v176, 0
  %v318 = vsel %vm238, %v177, 0
  %v321 = vsel %vm238, %v178, 0
  %v324 = vsel %vm238, %v179, 0
  %v327 = vsel %vm238, %v180, 0
  %v330 = vsel %vm238, %v181, 0
  %v333 = vsel %vm238, %v182, 0
  %v336 = vsel %vm238, %v183, 0
  %v339 = vsel %vm238, %v184, 0
  %v342 = vsel %vm238, %v185, 0
  %v345 = vsel %vm238, %v186, 0
  %v348 = vsel %vm238, %v187, 0
  %v351 = vsel %vm238, %v188, 0
  %v354 = vsel %vm238, %v189, 0
  %v357 = vsel %vm238, %v190, 0
  %v360 = vsel %vm238, %v191, 0
  %v363 = vsel %vm238, %v192, 0
  %v366 = vsel %vm238, %v193, 0
  %v369 = vsel %vm238, %v194, 0
  %v372 = vsel %vm238, %v195, 0
  %v375 = vsel %vm238, %v196, 0
  %v378 = vsel %vm238, %v197, 0
  %v381 = vsel %vm238, %v198, 0
  %v384 = vsel %vm238, %v199, 0
  %v387 = vsel %vm238, %v200, 0
  %v390 = vsel %vm238, %v201, 0
  %v393 = vsel %vm238, %v202, 0
  %v396 = vsel %vm238, %v203, 0
  %v399 = vsel %vm238, %v204, 0
  %v402 = vsel %vm238, %v205, 0
  %v405 = vsel %vm238, %v206, 0
  %v408 = vsel %vm238, %v207, 0
  %v411 = vsel %vm238, %v208, 0
  %v414 = vsel %vm238, %v209, 0
  %v417 = vsel %vm238, %v210, 0
  %v420 = vsel %vm238, %v211, 0
  %v423 = vsel %vm238, %v212, 0
  %v426 = vsel %vm238, %v213, 0
  %v429 = vsel %vm238, %v214, 0
  %431 = vmatprep.subr.bf16.mxu0 0
  %432 = vmatpush1.bf16.msra.mxu0 0
  %433 = vmatprep.subr.bf16.mxu0 0
  %434 = vmatpush1.bf16.msra.mxu0 0
  %435 = vmatprep.subr.bf16.mxu0 0
  %436 = vmatpush1.bf16.msra.mxu0 0
  %437 = vmatprep.subr.bf16.mxu0 0
  %438 = vmatpush1.bf16.msra.mxu0 0
  %439 = vmatprep.subr.bf16.mxu0 0
  %440 = vmatpush1.bf16.msra.mxu0 0
  %441 = vmatprep.subr.bf16.mxu0 0
  %442 = vmatpush1.bf16.msra.mxu0 0
  %443 = vmatprep.subr.bf16.mxu0 0
  %444 = vmatpush1.bf16.msra.mxu0 %v235
  %445 = vmatprep.subr.bf16.mxu0 0
  %446 = vmatpush1.bf16.msra.mxu0 %v234
  %447 = vmatprep.subr.bf16.mxu0 0
  %448 = vmatpush2.bf16.msra.mxu0 0
  %449 = vmatprep.subr.bf16.mxu0 0
  %450 = vmatpush2.bf16.msra.mxu0 0
  %451 = vmatprep.subr.bf16.mxu0 0
  %452 = vmatpush2.bf16.msra.mxu0 0
  %453 = vmatprep.subr.bf16.mxu0 0
  %454 = vmatpush2.bf16.msra.mxu0 0
  %455 = vmatprep.subr.bf16.mxu0 0
  %456 = vmatpush2.bf16.msra.mxu0 0
  %457 = vmatprep.subr.bf16.mxu0 0
  %458 = vmatpush2.bf16.msra.mxu0 0
  %459 = vmatprep.subr.bf16.mxu0 0
  %460 = vmatpush2.bf16.msra.mxu0 0
  %461 = vmatprep.subr.bf16.mxu0 0
  %462 = vmatpush2.bf16.msra.mxu0 0
  %463 = vmatprep.mubr.bf16.mxu0 0
  %464 = vmatmul.mubr.bf16.gmra.mxu0 %v240
  %v465 = vpop.f32.mrf.mxu0
  %v466 = vadd.f32 %v224, %v465
  %v467 = vpop.f32.mrf.mxu0
  %v468 = vpop.f32.mrf.mxu0
  %v469 = vadd.f32 %v224, %v468
  %v470 = vpop.f32.mrf.mxu0
  %471 = vmatprep.mubr.bf16.mxu0 0
  %472 = vmatmul.mubr.bf16.gmra.mxu0 %v243
  %v473 = vpop.f32.mrf.mxu0
  %v474 = vadd.f32 %v224, %v473
  %v475 = vpop.f32.mrf.mxu0
  %v476 = vpop.f32.mrf.mxu0
  %v477 = vadd.f32 %v224, %v476
  %v478 = vpop.f32.mrf.mxu0
  %479 = vmatprep.mubr.bf16.mxu0 0
  %480 = vmatmul.mubr.bf16.gmra.mxu0 %v246
  %v481 = vpop.f32.mrf.mxu0
  %v482 = vadd.f32 %v224, %v481
  %v483 = vpop.f32.mrf.mxu0
  %v484 = vpop.f32.mrf.mxu0
  %v485 = vadd.f32 %v224, %v484
  %v486 = vpop.f32.mrf.mxu0
  %487 = vmatprep.mubr.bf16.mxu0 0
  %488 = vmatmul.mubr.bf16.gmra.mxu0 %v249
  %v489 = vpop.f32.mrf.mxu0
  %v490 = vadd.f32 %v224, %v489
  %v491 = vpop.f32.mrf.mxu0
  %v492 = vpop.f32.mrf.mxu0
  %v493 = vadd.f32 %v224, %v492
  %v494 = vpop.f32.mrf.mxu0
  %495 = vmatprep.mubr.bf16.mxu0 0
  %496 = vmatmul.mubr.bf16.gmra.mxu0 %v252
  %v497 = vpop.f32.mrf.mxu0
  %v498 = vadd.f32 %v224, %v497
  %v499 = vpop.f32.mrf.mxu0
  %v500 = vpop.f32.mrf.mxu0
  %v501 = vadd.f32 %v224, %v500
  %v502 = vpop.f32.mrf.mxu0
  %503 = vmatprep.mubr.bf16.mxu0 0
  %504 = vmatmul.mubr.bf16.gmra.mxu0 %v255
  %v505 = vpop.f32.mrf.mxu0
  %v506 = vadd.f32 %v224, %v505
  %v507 = vpop.f32.mrf.mxu0
  %v508 = vpop.f32.mrf.mxu0
  %v509 = vadd.f32 %v224, %v508
  %v510 = vpop.f32.mrf.mxu0
  %511 = vmatprep.mubr.bf16.mxu0 0
  %512 = vmatmul.mubr.bf16.gmra.mxu0 %v258
  %v513 = vpop.f32.mrf.mxu0
  %v514 = vadd.f32 %v224, %v513
  %v515 = vpop.f32.mrf.mxu0
  %v516 = vpop.f32.mrf.mxu0
  %v517 = vadd.f32 %v224, %v516
  %v518 = vpop.f32.mrf.mxu0
  %519 = vmatprep.mubr.bf16.mxu0 0
  %520 = vmatmul.mubr.bf16.gmra.mxu0 %v261
  %v521 = vpop.f32.mrf.mxu0
  %v522 = vadd.f32 %v224, %v521
  %v523 = vpop.f32.mrf.mxu0
  %v524 = vpop.f32.mrf.mxu0
  %v525 = vadd.f32 %v224, %v524
  %v526 = vpop.f32.mrf.mxu0
  %527 = vmatprep.mubr.bf16.mxu0 0
  %528 = vmatmul.mubr.bf16.gmra.mxu0 %v264
  %v529 = vpop.f32.mrf.mxu0
  %v530 = vadd.f32 %v224, %v529
  %v531 = vpop.f32.mrf.mxu0
  %v532 = vpop.f32.mrf.mxu0
  %v533 = vadd.f32 %v224, %v532
  %v534 = vpop.f32.mrf.mxu0
  %535 = vmatprep.mubr.bf16.mxu0 0
  %536 = vmatmul.mubr.bf16.gmra.mxu0 %v267
  %v537 = vpop.f32.mrf.mxu0
  %v538 = vadd.f32 %v224, %v537
  %v539 = vpop.f32.mrf.mxu0
  %v540 = vpop.f32.mrf.mxu0
  %v541 = vadd.f32 %v224, %v540
  %v542 = vpop.f32.mrf.mxu0
  %543 = vmatprep.mubr.bf16.mxu0 0
  %544 = vmatmul.mubr.bf16.gmra.mxu0 %v270
  %v545 = vpop.f32.mrf.mxu0
  %v546 = vadd.f32 %v224, %v545
  %v547 = vpop.f32.mrf.mxu0
  %v548 = vpop.f32.mrf.mxu0
  %v549 = vadd.f32 %v224, %v548
  %v550 = vpop.f32.mrf.mxu0
  %551 = vmatprep.mubr.bf16.mxu0 0
  %552 = vmatmul.mubr.bf16.gmra.mxu0 %v273
  %v553 = vpop.f32.mrf.mxu0
  %v554 = vadd.f32 %v224, %v553
  %v555 = vpop.f32.mrf.mxu0
  %v556 = vpop.f32.mrf.mxu0
  %v557 = vadd.f32 %v224, %v556
  %v558 = vpop.f32.mrf.mxu0
  %559 = vmatprep.mubr.bf16.mxu0 0
  %560 = vmatmul.mubr.bf16.gmra.mxu0 %v276
  %v561 = vpop.f32.mrf.mxu0
  %v562 = vadd.f32 %v224, %v561
  %v563 = vpop.f32.mrf.mxu0
  %v564 = vpop.f32.mrf.mxu0
  %v565 = vadd.f32 %v224, %v564
  %v566 = vpop.f32.mrf.mxu0
  %567 = vmatprep.mubr.bf16.mxu0 0
  %568 = vmatmul.mubr.bf16.gmra.mxu0 %v279
  %v569 = vpop.f32.mrf.mxu0
  %v570 = vadd.f32 %v224, %v569
  %v571 = vpop.f32.mrf.mxu0
  %v572 = vpop.f32.mrf.mxu0
  %v573 = vadd.f32 %v224, %v572
  %v574 = vpop.f32.mrf.mxu0
  %575 = vmatprep.mubr.bf16.mxu0 0
  %576 = vmatmul.mubr.bf16.gmra.mxu0 %v282
  %v577 = vpop.f32.mrf.mxu0
  %v578 = vadd.f32 %v224, %v577
  %v579 = vpop.f32.mrf.mxu0
  %v580 = vpop.f32.mrf.mxu0
  %v581 = vadd.f32 %v224, %v580
  %v582 = vpop.f32.mrf.mxu0
  %583 = vmatprep.mubr.bf16.mxu0 0
  %584 = vmatmul.mubr.bf16.gmra.mxu0 %v285
  %v585 = vpop.f32.mrf.mxu0
  %v586 = vadd.f32 %v224, %v585
  %v587 = vpop.f32.mrf.mxu0
  %v588 = vpop.f32.mrf.mxu0
  %v589 = vadd.f32 %v224, %v588
  %v590 = vpop.f32.mrf.mxu0
  %591 = vmatprep.mubr.bf16.mxu0 0
  %592 = vmatmul.mubr.bf16.gmra.mxu0 %v288
  %v593 = vpop.f32.mrf.mxu0
  %v594 = vadd.f32 %v224, %v593
  %v595 = vpop.f32.mrf.mxu0
  %v596 = vpop.f32.mrf.mxu0
  %v597 = vadd.f32 %v224, %v596
  %v598 = vpop.f32.mrf.mxu0
  %599 = vmatprep.mubr.bf16.mxu0 0
  %600 = vmatmul.mubr.bf16.gmra.mxu0 %v291
  %v601 = vpop.f32.mrf.mxu0
  %v602 = vadd.f32 %v224, %v601
  %v603 = vpop.f32.mrf.mxu0
  %v604 = vpop.f32.mrf.mxu0
  %v605 = vadd.f32 %v224, %v604
  %v606 = vpop.f32.mrf.mxu0
  %607 = vmatprep.mubr.bf16.mxu0 0
  %608 = vmatmul.mubr.bf16.gmra.mxu0 %v294
  %v609 = vpop.f32.mrf.mxu0
  %v610 = vadd.f32 %v224, %v609
  %v611 = vpop.f32.mrf.mxu0
  %v612 = vpop.f32.mrf.mxu0
  %v613 = vadd.f32 %v224, %v612
  %v614 = vpop.f32.mrf.mxu0
  %615 = vmatprep.mubr.bf16.mxu0 0
  %616 = vmatmul.mubr.bf16.gmra.mxu0 %v297
  %v617 = vpop.f32.mrf.mxu0
  %v618 = vadd.f32 %v224, %v617
  %v619 = vpop.f32.mrf.mxu0
  %v620 = vpop.f32.mrf.mxu0
  %v621 = vadd.f32 %v224, %v620
  %v622 = vpop.f32.mrf.mxu0
  %623 = vmatprep.mubr.bf16.mxu0 0
  %624 = vmatmul.mubr.bf16.gmra.mxu0 %v300
  %v625 = vpop.f32.mrf.mxu0
  %v626 = vadd.f32 %v224, %v625
  %v627 = vpop.f32.mrf.mxu0
  %v628 = vpop.f32.mrf.mxu0
  %v629 = vadd.f32 %v224, %v628
  %v630 = vpop.f32.mrf.mxu0
  %631 = vmatprep.mubr.bf16.mxu0 0
  %632 = vmatmul.mubr.bf16.gmra.mxu0 %v303
  %v633 = vpop.f32.mrf.mxu0
  %v634 = vadd.f32 %v224, %v633
  %v635 = vpop.f32.mrf.mxu0
  %v636 = vpop.f32.mrf.mxu0
  %v637 = vadd.f32 %v224, %v636
  %v638 = vpop.f32.mrf.mxu0
  %639 = vmatprep.mubr.bf16.mxu0 0
  %640 = vmatmul.mubr.bf16.gmra.mxu0 %v306
  %v641 = vpop.f32.mrf.mxu0
  %v642 = vadd.f32 %v224, %v641
  %v643 = vpop.f32.mrf.mxu0
  %v644 = vpop.f32.mrf.mxu0
  %v645 = vadd.f32 %v224, %v644
  %v646 = vpop.f32.mrf.mxu0
  %647 = vmatprep.mubr.bf16.mxu0 0
  %648 = vmatmul.mubr.bf16.gmra.mxu0 %v309
  %v649 = vpop.f32.mrf.mxu0
  %v650 = vadd.f32 %v224, %v649
  %v651 = vpop.f32.mrf.mxu0
  %v652 = vpop.f32.mrf.mxu0
  %v653 = vadd.f32 %v224, %v652
  %v654 = vpop.f32.mrf.mxu0
  %655 = vmatprep.mubr.bf16.mxu0 0
  %656 = vmatmul.mubr.bf16.gmra.mxu0 %v312
  %v657 = vpop.f32.mrf.mxu0
  %v658 = vadd.f32 %v224, %v657
  %v659 = vpop.f32.mrf.mxu0
  %v660 = vpop.f32.mrf.mxu0
  %v661 = vadd.f32 %v224, %v660
  %v662 = vpop.f32.mrf.mxu0
  %663 = vmatprep.mubr.bf16.mxu0 0
  %664 = vmatmul.mubr.bf16.gmra.mxu0 %v315
  %v665 = vpop.f32.mrf.mxu0
  %v666 = vadd.f32 %v224, %v665
  %v667 = vpop.f32.mrf.mxu0
  %v668 = vpop.f32.mrf.mxu0
  %v669 = vadd.f32 %v224, %v668
  %v670 = vpop.f32.mrf.mxu0
  %671 = vmatprep.mubr.bf16.mxu0 0
  %672 = vmatmul.mubr.bf16.gmra.mxu0 %v318
  %v673 = vpop.f32.mrf.mxu0
  %v674 = vadd.f32 %v224, %v673
  %v675 = vpop.f32.mrf.mxu0
  %v676 = vpop.f32.mrf.mxu0
  %v677 = vadd.f32 %v224, %v676
  %v678 = vpop.f32.mrf.mxu0
  %679 = vmatprep.mubr.bf16.mxu0 0
  %680 = vmatmul.mubr.bf16.gmra.mxu0 %v321
  %v681 = vpop.f32.mrf.mxu0
  %v682 = vadd.f32 %v224, %v681
  %v683 = vpop.f32.mrf.mxu0
  %v684 = vpop.f32.mrf.mxu0
  %v685 = vadd.f32 %v224, %v684
  %v686 = vpop.f32.mrf.mxu0
  %687 = vmatprep.mubr.bf16.mxu0 0
  %688 = vmatmul.mubr.bf16.gmra.mxu0 %v324
  %v689 = vpop.f32.mrf.mxu0
  %v690 = vadd.f32 %v224, %v689
  %v691 = vpop.f32.mrf.mxu0
  %v692 = vpop.f32.mrf.mxu0
  %v693 = vadd.f32 %v224, %v692
  %v694 = vpop.f32.mrf.mxu0
  %695 = vmatprep.mubr.bf16.mxu0 0
  %696 = vmatmul.mubr.bf16.gmra.mxu0 %v327
  %v697 = vpop.f32.mrf.mxu0
  %v698 = vadd.f32 %v224, %v697
  %v699 = vpop.f32.mrf.mxu0
  %v700 = vpop.f32.mrf.mxu0
  %v701 = vadd.f32 %v224, %v700
  %v702 = vpop.f32.mrf.mxu0
  %703 = vmatprep.mubr.bf16.mxu0 0
  %704 = vmatmul.mubr.bf16.gmra.mxu0 %v330
  %v705 = vpop.f32.mrf.mxu0
  %v706 = vadd.f32 %v224, %v705
  %v707 = vpop.f32.mrf.mxu0
  %v708 = vpop.f32.mrf.mxu0
  %v709 = vadd.f32 %v224, %v708
  %v710 = vpop.f32.mrf.mxu0
  %711 = vmatprep.mubr.bf16.mxu0 0
  %712 = vmatmul.mubr.bf16.gmra.mxu0 %v333
  %v713 = vpop.f32.mrf.mxu0
  %v714 = vadd.f32 %v224, %v713
  %v715 = vpop.f32.mrf.mxu0
  %v716 = vpop.f32.mrf.mxu0
  %v717 = vadd.f32 %v224, %v716
  %v718 = vpop.f32.mrf.mxu0
  %719 = vmatprep.mubr.bf16.mxu0 0
  %720 = vmatmul.mubr.bf16.gmra.mxu0 %v336
  %v721 = vpop.f32.mrf.mxu0
  %v722 = vadd.f32 %v224, %v721
  %v723 = vpop.f32.mrf.mxu0
  %v724 = vpop.f32.mrf.mxu0
  %v725 = vadd.f32 %v224, %v724
  %v726 = vpop.f32.mrf.mxu0
  %727 = vmatprep.mubr.bf16.mxu0 0
  %728 = vmatmul.mubr.bf16.gmra.mxu0 %v339
  %v729 = vpop.f32.mrf.mxu0
  %v730 = vadd.f32 %v224, %v729
  %v731 = vpop.f32.mrf.mxu0
  %v732 = vpop.f32.mrf.mxu0
  %v733 = vadd.f32 %v224, %v732
  %v734 = vpop.f32.mrf.mxu0
  %735 = vmatprep.mubr.bf16.mxu0 0
  %736 = vmatmul.mubr.bf16.gmra.mxu0 %v342
  %v737 = vpop.f32.mrf.mxu0
  %v738 = vadd.f32 %v224, %v737
  %v739 = vpop.f32.mrf.mxu0
  %v740 = vpop.f32.mrf.mxu0
  %v741 = vadd.f32 %v224, %v740
  %v742 = vpop.f32.mrf.mxu0
  %743 = vmatprep.mubr.bf16.mxu0 0
  %744 = vmatmul.mubr.bf16.gmra.mxu0 %v345
  %v745 = vpop.f32.mrf.mxu0
  %v746 = vadd.f32 %v224, %v745
  %v747 = vpop.f32.mrf.mxu0
  %v748 = vpop.f32.mrf.mxu0
  %v749 = vadd.f32 %v224, %v748
  %v750 = vpop.f32.mrf.mxu0
  %751 = vmatprep.mubr.bf16.mxu0 0
  %752 = vmatmul.mubr.bf16.gmra.mxu0 %v348
  %v753 = vpop.f32.mrf.mxu0
  %v754 = vadd.f32 %v224, %v753
  %v755 = vpop.f32.mrf.mxu0
  %v756 = vpop.f32.mrf.mxu0
  %v757 = vadd.f32 %v224, %v756
  %v758 = vpop.f32.mrf.mxu0
  %759 = vmatprep.mubr.bf16.mxu0 0
  %760 = vmatmul.mubr.bf16.gmra.mxu0 %v351
  %v761 = vpop.f32.mrf.mxu0
  %v762 = vadd.f32 %v224, %v761
  %v763 = vpop.f32.mrf.mxu0
  %v764 = vpop.f32.mrf.mxu0
  %v765 = vadd.f32 %v224, %v764
  %v766 = vpop.f32.mrf.mxu0
  %767 = vmatprep.mubr.bf16.mxu0 0
  %768 = vmatmul.mubr.bf16.gmra.mxu0 %v354
  %v769 = vpop.f32.mrf.mxu0
  %v770 = vadd.f32 %v224, %v769
  %v771 = vpop.f32.mrf.mxu0
  %v772 = vpop.f32.mrf.mxu0
  %v773 = vadd.f32 %v224, %v772
  %v774 = vpop.f32.mrf.mxu0
  %775 = vmatprep.mubr.bf16.mxu0 0
  %776 = vmatmul.mubr.bf16.gmra.mxu0 %v357
  %v777 = vpop.f32.mrf.mxu0
  %v778 = vadd.f32 %v224, %v777
  %v779 = vpop.f32.mrf.mxu0
  %v780 = vpop.f32.mrf.mxu0
  %v781 = vadd.f32 %v224, %v780
  %v782 = vpop.f32.mrf.mxu0
  %783 = vmatprep.mubr.bf16.mxu0 0
  %784 = vmatmul.mubr.bf16.gmra.mxu0 %v360
  %v785 = vpop.f32.mrf.mxu0
  %v786 = vadd.f32 %v224, %v785
  %v787 = vpop.f32.mrf.mxu0
  %v788 = vpop.f32.mrf.mxu0
  %v789 = vadd.f32 %v224, %v788
  %v790 = vpop.f32.mrf.mxu0
  %791 = vmatprep.mubr.bf16.mxu0 0
  %792 = vmatmul.mubr.bf16.gmra.mxu0 %v363
  %v793 = vpop.f32.mrf.mxu0
  %v794 = vadd.f32 %v224, %v793
  %v795 = vpop.f32.mrf.mxu0
  %v796 = vpop.f32.mrf.mxu0
  %v797 = vadd.f32 %v224, %v796
  %v798 = vpop.f32.mrf.mxu0
  %799 = vmatprep.mubr.bf16.mxu0 0
  %800 = vmatmul.mubr.bf16.gmra.mxu0 %v366
  %v801 = vpop.f32.mrf.mxu0
  %v802 = vadd.f32 %v224, %v801
  %v803 = vpop.f32.mrf.mxu0
  %v804 = vpop.f32.mrf.mxu0
  %v805 = vadd.f32 %v224, %v804
  %v806 = vpop.f32.mrf.mxu0
  %807 = vmatprep.mubr.bf16.mxu0 0
  %808 = vmatmul.mubr.bf16.gmra.mxu0 %v369
  %v809 = vpop.f32.mrf.mxu0
  %v810 = vadd.f32 %v224, %v809
  %v811 = vpop.f32.mrf.mxu0
  %v812 = vpop.f32.mrf.mxu0
  %v813 = vadd.f32 %v224, %v812
  %v814 = vpop.f32.mrf.mxu0
  %815 = vmatprep.mubr.bf16.mxu0 0
  %816 = vmatmul.mubr.bf16.gmra.mxu0 %v372
  %v817 = vpop.f32.mrf.mxu0
  %v818 = vadd.f32 %v224, %v817
  %v819 = vpop.f32.mrf.mxu0
  %v820 = vpop.f32.mrf.mxu0
  %v821 = vadd.f32 %v224, %v820
  %v822 = vpop.f32.mrf.mxu0
  %823 = vmatprep.mubr.bf16.mxu0 0
  %824 = vmatmul.mubr.bf16.gmra.mxu0 %v375
  %v825 = vpop.f32.mrf.mxu0
  %v826 = vadd.f32 %v224, %v825
  %v827 = vpop.f32.mrf.mxu0
  %v828 = vpop.f32.mrf.mxu0
  %v829 = vadd.f32 %v224, %v828
  %v830 = vpop.f32.mrf.mxu0
  %831 = vmatprep.mubr.bf16.mxu0 0
  %832 = vmatmul.mubr.bf16.gmra.mxu0 %v378
  %v833 = vpop.f32.mrf.mxu0
  %v834 = vadd.f32 %v224, %v833
  %v835 = vpop.f32.mrf.mxu0
  %v836 = vpop.f32.mrf.mxu0
  %v837 = vadd.f32 %v224, %v836
  %v838 = vpop.f32.mrf.mxu0
  %839 = vmatprep.mubr.bf16.mxu0 0
  %840 = vmatmul.mubr.bf16.gmra.mxu0 %v381
  %v841 = vpop.f32.mrf.mxu0
  %v842 = vadd.f32 %v224, %v841
  %v843 = vpop.f32.mrf.mxu0
  %v844 = vpop.f32.mrf.mxu0
  %v845 = vadd.f32 %v224, %v844
  %v846 = vpop.f32.mrf.mxu0
  %847 = vmatprep.mubr.bf16.mxu0 0
  %848 = vmatmul.mubr.bf16.gmra.mxu0 %v384
  %v849 = vpop.f32.mrf.mxu0
  %v850 = vadd.f32 %v224, %v849
  %v851 = vpop.f32.mrf.mxu0
  %v852 = vpop.f32.mrf.mxu0
  %v853 = vadd.f32 %v224, %v852
  %v854 = vpop.f32.mrf.mxu0
  %855 = vmatprep.mubr.bf16.mxu0 0
  %856 = vmatmul.mubr.bf16.gmra.mxu0 %v387
  %v857 = vpop.f32.mrf.mxu0
  %v858 = vadd.f32 %v224, %v857
  %v859 = vpop.f32.mrf.mxu0
  %v860 = vpop.f32.mrf.mxu0
  %v861 = vadd.f32 %v224, %v860
  %v862 = vpop.f32.mrf.mxu0
  %863 = vmatprep.mubr.bf16.mxu0 0
  %864 = vmatmul.mubr.bf16.gmra.mxu0 %v390
  %v865 = vpop.f32.mrf.mxu0
  %v866 = vadd.f32 %v224, %v865
  %v867 = vpop.f32.mrf.mxu0
  %v868 = vpop.f32.mrf.mxu0
  %v869 = vadd.f32 %v224, %v868
  %v870 = vpop.f32.mrf.mxu0
  %871 = vmatprep.mubr.bf16.mxu0 0
  %872 = vmatmul.mubr.bf16.gmra.mxu0 %v393
  %v873 = vpop.f32.mrf.mxu0
  %v874 = vadd.f32 %v224, %v873
  %v875 = vpop.f32.mrf.mxu0
  %v876 = vpop.f32.mrf.mxu0
  %v877 = vadd.f32 %v224, %v876
  %v878 = vpop.f32.mrf.mxu0
  %879 = vmatprep.mubr.bf16.mxu0 0
  %880 = vmatmul.mubr.bf16.gmra.mxu0 %v396
  %v881 = vpop.f32.mrf.mxu0
  %v882 = vadd.f32 %v224, %v881
  %v883 = vpop.f32.mrf.mxu0
  %v884 = vpop.f32.mrf.mxu0
  %v885 = vadd.f32 %v224, %v884
  %v886 = vpop.f32.mrf.mxu0
  %887 = vmatprep.mubr.bf16.mxu0 0
  %888 = vmatmul.mubr.bf16.gmra.mxu0 %v399
  %v889 = vpop.f32.mrf.mxu0
  %v890 = vadd.f32 %v224, %v889
  %v891 = vpop.f32.mrf.mxu0
  %v892 = vpop.f32.mrf.mxu0
  %v893 = vadd.f32 %v224, %v892
  %v894 = vpop.f32.mrf.mxu0
  %895 = vmatprep.mubr.bf16.mxu0 0
  %896 = vmatmul.mubr.bf16.gmra.mxu0 %v402
  %v897 = vpop.f32.mrf.mxu0
  %v898 = vadd.f32 %v224, %v897
  %v899 = vpop.f32.mrf.mxu0
  %v900 = vpop.f32.mrf.mxu0
  %v901 = vadd.f32 %v224, %v900
  %v902 = vpop.f32.mrf.mxu0
  %903 = vmatprep.mubr.bf16.mxu0 0
  %904 = vmatmul.mubr.bf16.gmra.mxu0 %v405
  %v905 = vpop.f32.mrf.mxu0
  %v906 = vadd.f32 %v224, %v905
  %v907 = vpop.f32.mrf.mxu0
  %v908 = vpop.f32.mrf.mxu0
  %v909 = vadd.f32 %v224, %v908
  %v910 = vpop.f32.mrf.mxu0
  %911 = vmatprep.mubr.bf16.mxu0 0
  %912 = vmatmul.mubr.bf16.gmra.mxu0 %v408
  %v913 = vpop.f32.mrf.mxu0
  %v914 = vadd.f32 %v224, %v913
  %v915 = vpop.f32.mrf.mxu0
  %v916 = vpop.f32.mrf.mxu0
  %v917 = vadd.f32 %v224, %v916
  %v918 = vpop.f32.mrf.mxu0
  %919 = vmatprep.mubr.bf16.mxu0 0
  %920 = vmatmul.mubr.bf16.gmra.mxu0 %v411
  %v921 = vpop.f32.mrf.mxu0
  %v922 = vadd.f32 %v224, %v921
  %v923 = vpop.f32.mrf.mxu0
  %v924 = vpop.f32.mrf.mxu0
  %v925 = vadd.f32 %v224, %v924
  %v926 = vpop.f32.mrf.mxu0
  %927 = vmatprep.mubr.bf16.mxu0 0
  %928 = vmatmul.mubr.bf16.gmra.mxu0 %v414
  %v929 = vpop.f32.mrf.mxu0
  %v930 = vadd.f32 %v224, %v929
  %v931 = vpop.f32.mrf.mxu0
  %v932 = vpop.f32.mrf.mxu0
  %v933 = vadd.f32 %v224, %v932
  %v934 = vpop.f32.mrf.mxu0
  %935 = vmatprep.mubr.bf16.mxu0 0
  %936 = vmatmul.mubr.bf16.gmra.mxu0 %v417
  %v937 = vpop.f32.mrf.mxu0
  %v938 = vadd.f32 %v224, %v937
  %v939 = vpop.f32.mrf.mxu0
  %v940 = vpop.f32.mrf.mxu0
  %v941 = vadd.f32 %v224, %v940
  %v942 = vpop.f32.mrf.mxu0
  %943 = vmatprep.mubr.bf16.mxu0 0
  %944 = vmatmul.mubr.bf16.gmra.mxu0 %v420
  %v945 = vpop.f32.mrf.mxu0
  %v946 = vadd.f32 %v224, %v945
  %v947 = vpop.f32.mrf.mxu0
  %v948 = vpop.f32.mrf.mxu0
  %v949 = vadd.f32 %v224, %v948
  %v950 = vpop.f32.mrf.mxu0
  %951 = vmatprep.mubr.bf16.mxu0 0
  %952 = vmatmul.mubr.bf16.gmra.mxu0 %v423
  %v953 = vpop.f32.mrf.mxu0
  %v954 = vadd.f32 %v224, %v953
  %v955 = vpop.f32.mrf.mxu0
  %v956 = vpop.f32.mrf.mxu0
  %v957 = vadd.f32 %v224, %v956
  %v958 = vpop.f32.mrf.mxu0
  %959 = vmatprep.mubr.bf16.mxu0 0
  %960 = vmatmul.mubr.bf16.gmra.mxu0 %v426
  %v961 = vpop.f32.mrf.mxu0
  %v962 = vadd.f32 %v224, %v961
  %v963 = vpop.f32.mrf.mxu0
  %v964 = vpop.f32.mrf.mxu0
  %v965 = vadd.f32 %v224, %v964
  %v966 = vpop.f32.mrf.mxu0
  %967 = vmatprep.mubr.bf16.mxu0 0
  %968 = vmatmul.mubr.bf16.gmra.mxu0 %v429
  %v969 = vpop.f32.mrf.mxu0
  %v970 = vadd.f32 %v224, %v969
  %v971 = vpop.f32.mrf.mxu0
  %v972 = vpop.f32.mrf.mxu0
  %v973 = vadd.f32 %v224, %v972
  %v974 = vpop.f32.mrf.mxu0
  %975 = vdwg.mxu0
  %v976 = vld [vmem:[%s3] sm:$0xf]
  %v977 = vld [vmem:[%s3 + $0x4] sm:$0xf]
  %v978 = vld [vmem:[%s3 + $0x8] sm:$0xf]
  %v979 = vld [vmem:[%s3 + $0xc] sm:$0xf]
  %v980 = vld [vmem:[%s4] sm:$0x1]
  %v982 = vlaneseq
  %v983 = vshrl.u32 %v982, 7
  %v984 = vsub.s32 0, %v983
  %v985 = vrot.slane %v980, %v984
  %v991 = vunpack.c.l.b16 %v976
  %v992 = vunpack.c.l.b16 %v977
  %v993 = vunpack.c.l.b16 %v978
  %v994 = vunpack.c.l.b16 %v979
  %v995 = vpack.c.b16 %v992, %v991
  %v996 = vpack.c.b16 %v994, %v993
  %999 = vmatprep.subr.bf16.mxu0 0
  %1000 = vmatpush1.bf16.msra.mxu0 0
  %1001 = vmatprep.subr.bf16.mxu0 0
  %1002 = vmatpush1.bf16.msra.mxu0 0
  %1003 = vmatprep.subr.bf16.mxu0 0
  %1004 = vmatpush1.bf16.msra.mxu0 0
  %1005 = vmatprep.subr.bf16.mxu0 0
  %1006 = vmatpush1.bf16.msra.mxu0 0
  %1007 = vmatprep.subr.bf16.mxu0 0
  %1008 = vmatpush1.bf16.msra.mxu0 0
  %1009 = vmatprep.subr.bf16.mxu0 0
  %1010 = vmatpush1.bf16.msra.mxu0 0
  %1011 = vmatprep.subr.bf16.mxu0 0
  %1012 = vmatpush1.bf16.msra.mxu0 %v996
  %1013 = vmatprep.subr.bf16.mxu0 0
  %1014 = vmatpush1.bf16.msra.mxu0 %v995
  %1015 = vmatprep.subr.bf16.mxu0 0
  %1016 = vmatpush2.bf16.msra.mxu0 0
  %1017 = vmatprep.subr.bf16.mxu0 0
  %1018 = vmatpush2.bf16.msra.mxu0 0
  %1019 = vmatprep.subr.bf16.mxu0 0
  %1020 = vmatpush2.bf16.msra.mxu0 0
  %1021 = vmatprep.subr.bf16.mxu0 0
  %1022 = vmatpush2.bf16.msra.mxu0 0
  %1023 = vmatprep.subr.bf16.mxu0 0
  %1024 = vmatpush2.bf16.msra.mxu0 0
  %1025 = vmatprep.subr.bf16.mxu0 0
  %1026 = vmatpush2.bf16.msra.mxu0 0
  %1027 = vmatprep.subr.bf16.mxu0 0
  %1028 = vmatpush2.bf16.msra.mxu0 0
  %1029 = vmatprep.subr.bf16.mxu0 0
  %1030 = vmatpush2.bf16.msra.mxu0 0
  %1031 = vmatprep.mubr.bf16.mxu0 0
  %1032 = vmatmul.mubr.bf16.gmra.mxu0 %v240
  %v1033 = vpop.f32.mrf.mxu0
  %v1034 = vadd.f32 %v985, %v1033
  %v1035 = vpop.f32.mrf.mxu0
  %v1036 = vpop.f32.mrf.mxu0
  %v1037 = vadd.f32 %v985, %v1036
  %v1038 = vpop.f32.mrf.mxu0
  %1039 = vmatprep.mubr.bf16.mxu0 0
  %1040 = vmatmul.mubr.bf16.gmra.mxu0 %v243
  %v1041 = vpop.f32.mrf.mxu0
  %v1042 = vadd.f32 %v985, %v1041
  %v1043 = vpop.f32.mrf.mxu0
  %v1044 = vpop.f32.mrf.mxu0
  %v1045 = vadd.f32 %v985, %v1044
  %v1046 = vpop.f32.mrf.mxu0
  %1047 = vmatprep.mubr.bf16.mxu0 0
  %1048 = vmatmul.mubr.bf16.gmra.mxu0 %v246
  %v1049 = vpop.f32.mrf.mxu0
  %v1050 = vadd.f32 %v985, %v1049
  %v1051 = vpop.f32.mrf.mxu0
  %v1052 = vpop.f32.mrf.mxu0
  %v1053 = vadd.f32 %v985, %v1052
  %v1054 = vpop.f32.mrf.mxu0
  %1055 = vmatprep.mubr.bf16.mxu0 0
  %1056 = vmatmul.mubr.bf16.gmra.mxu0 %v249
  %v1057 = vpop.f32.mrf.mxu0
  %v1058 = vadd.f32 %v985, %v1057
  %v1059 = vpop.f32.mrf.mxu0
  %v1060 = vpop.f32.mrf.mxu0
  %v1061 = vadd.f32 %v985, %v1060
  %v1062 = vpop.f32.mrf.mxu0
  %1063 = vmatprep.mubr.bf16.mxu0 0
  %1064 = vmatmul.mubr.bf16.gmra.mxu0 %v252
  %v1065 = vpop.f32.mrf.mxu0
  %v1066 = vadd.f32 %v985, %v1065
  %v1067 = vpop.f32.mrf.mxu0
  %v1068 = vpop.f32.mrf.mxu0
  %v1069 = vadd.f32 %v985, %v1068
  %v1070 = vpop.f32.mrf.mxu0
  %1071 = vmatprep.mubr.bf16.mxu0 0
  %1072 = vmatmul.mubr.bf16.gmra.mxu0 %v255
  %v1073 = vpop.f32.mrf.mxu0
  %v1074 = vadd.f32 %v985, %v1073
  %v1075 = vpop.f32.mrf.mxu0
  %v1076 = vpop.f32.mrf.mxu0
  %v1077 = vadd.f32 %v985, %v1076
  %v1078 = vpop.f32.mrf.mxu0
  %1079 = vmatprep.mubr.bf16.mxu0 0
  %1080 = vmatmul.mubr.bf16.gmra.mxu0 %v258
  %v1081 = vpop.f32.mrf.mxu0
  %v1082 = vadd.f32 %v985, %v1081
  %v1083 = vpop.f32.mrf.mxu0
  %v1084 = vpop.f32.mrf.mxu0
  %v1085 = vadd.f32 %v985, %v1084
  %v1086 = vpop.f32.mrf.mxu0
  %1087 = vmatprep.mubr.bf16.mxu0 0
  %1088 = vmatmul.mubr.bf16.gmra.mxu0 %v261
  %v1089 = vpop.f32.mrf.mxu0
  %v1090 = vadd.f32 %v985, %v1089
  %v1091 = vpop.f32.mrf.mxu0
  %v1092 = vpop.f32.mrf.mxu0
  %v1093 = vadd.f32 %v985, %v1092
  %v1094 = vpop.f32.mrf.mxu0
  %1095 = vmatprep.mubr.bf16.mxu0 0
  %1096 = vmatmul.mubr.bf16.gmra.mxu0 %v264
  %v1097 = vpop.f32.mrf.mxu0
  %v1098 = vadd.f32 %v985, %v1097
  %v1099 = vpop.f32.mrf.mxu0
  %v1100 = vpop.f32.mrf.mxu0
  %v1101 = vadd.f32 %v985, %v1100
  %v1102 = vpop.f32.mrf.mxu0
  %1103 = vmatprep.mubr.bf16.mxu0 0
  %1104 = vmatmul.mubr.bf16.gmra.mxu0 %v267
  %v1105 = vpop.f32.mrf.mxu0
  %v1106 = vadd.f32 %v985, %v1105
  %v1107 = vpop.f32.mrf.mxu0
  %v1108 = vpop.f32.mrf.mxu0
  %v1109 = vadd.f32 %v985, %v1108
  %v1110 = vpop.f32.mrf.mxu0
  %1111 = vmatprep.mubr.bf16.mxu0 0
  %1112 = vmatmul.mubr.bf16.gmra.mxu0 %v270
  %v1113 = vpop.f32.mrf.mxu0
  %v1114 = vadd.f32 %v985, %v1113
  %v1115 = vpop.f32.mrf.mxu0
  %v1116 = vpop.f32.mrf.mxu0
  %v1117 = vadd.f32 %v985, %v1116
  %v1118 = vpop.f32.mrf.mxu0
  %1119 = vmatprep.mubr.bf16.mxu0 0
  %1120 = vmatmul.mubr.bf16.gmra.mxu0 %v273
  %v1121 = vpop.f32.mrf.mxu0
  %v1122 = vadd.f32 %v985, %v1121
  %v1123 = vpop.f32.mrf.mxu0
  %v1124 = vpop.f32.mrf.mxu0
  %v1125 = vadd.f32 %v985, %v1124
  %v1126 = vpop.f32.mrf.mxu0
  %1127 = vmatprep.mubr.bf16.mxu0 0
  %1128 = vmatmul.mubr.bf16.gmra.mxu0 %v276
  %v1129 = vpop.f32.mrf.mxu0
  %v1130 = vadd.f32 %v985, %v1129
  %v1131 = vpop.f32.mrf.mxu0
  %v1132 = vpop.f32.mrf.mxu0
  %v1133 = vadd.f32 %v985, %v1132
  %v1134 = vpop.f32.mrf.mxu0
  %1135 = vmatprep.mubr.bf16.mxu0 0
  %1136 = vmatmul.mubr.bf16.gmra.mxu0 %v279
  %v1137 = vpop.f32.mrf.mxu0
  %v1138 = vadd.f32 %v985, %v1137
  %v1139 = vpop.f32.mrf.mxu0
  %v1140 = vpop.f32.mrf.mxu0
  %v1141 = vadd.f32 %v985, %v1140
  %v1142 = vpop.f32.mrf.mxu0
  %1143 = vmatprep.mubr.bf16.mxu0 0
  %1144 = vmatmul.mubr.bf16.gmra.mxu0 %v282
  %v1145 = vpop.f32.mrf.mxu0
  %v1146 = vadd.f32 %v985, %v1145
  %v1147 = vpop.f32.mrf.mxu0
  %v1148 = vpop.f32.mrf.mxu0
  %v1149 = vadd.f32 %v985, %v1148
  %v1150 = vpop.f32.mrf.mxu0
  %1151 = vmatprep.mubr.bf16.mxu0 0
  %1152 = vmatmul.mubr.bf16.gmra.mxu0 %v285
  %v1153 = vpop.f32.mrf.mxu0
  %v1154 = vadd.f32 %v985, %v1153
  %v1155 = vpop.f32.mrf.mxu0
  %v1156 = vpop.f32.mrf.mxu0
  %v1157 = vadd.f32 %v985, %v1156
  %v1158 = vpop.f32.mrf.mxu0
  %1159 = vmatprep.mubr.bf16.mxu0 0
  %1160 = vmatmul.mubr.bf16.gmra.mxu0 %v288
  %v1161 = vpop.f32.mrf.mxu0
  %v1162 = vadd.f32 %v985, %v1161
  %v1163 = vpop.f32.mrf.mxu0
  %v1164 = vpop.f32.mrf.mxu0
  %v1165 = vadd.f32 %v985, %v1164
  %v1166 = vpop.f32.mrf.mxu0
  %1167 = vmatprep.mubr.bf16.mxu0 0
  %1168 = vmatmul.mubr.bf16.gmra.mxu0 %v291
  %v1169 = vpop.f32.mrf.mxu0
  %v1170 = vadd.f32 %v985, %v1169
  %v1171 = vpop.f32.mrf.mxu0
  %v1172 = vpop.f32.mrf.mxu0
  %v1173 = vadd.f32 %v985, %v1172
  %v1174 = vpop.f32.mrf.mxu0
  %1175 = vmatprep.mubr.bf16.mxu0 0
  %1176 = vmatmul.mubr.bf16.gmra.mxu0 %v294
  %v1177 = vpop.f32.mrf.mxu0
  %v1178 = vadd.f32 %v985, %v1177
  %v1179 = vpop.f32.mrf.mxu0
  %v1180 = vpop.f32.mrf.mxu0
  %v1181 = vadd.f32 %v985, %v1180
  %v1182 = vpop.f32.mrf.mxu0
  %1183 = vmatprep.mubr.bf16.mxu0 0
  %1184 = vmatmul.mubr.bf16.gmra.mxu0 %v297
  %v1185 = vpop.f32.mrf.mxu0
  %v1186 = vadd.f32 %v985, %v1185
  %v1187 = vpop.f32.mrf.mxu0
  %v1188 = vpop.f32.mrf.mxu0
  %v1189 = vadd.f32 %v985, %v1188
  %v1190 = vpop.f32.mrf.mxu0
  %1191 = vmatprep.mubr.bf16.mxu0 0
  %1192 = vmatmul.mubr.bf16.gmra.mxu0 %v300
  %v1193 = vpop.f32.mrf.mxu0
  %v1194 = vadd.f32 %v985, %v1193
  %v1195 = vpop.f32.mrf.mxu0
  %v1196 = vpop.f32.mrf.mxu0
  %v1197 = vadd.f32 %v985, %v1196
  %v1198 = vpop.f32.mrf.mxu0
  %1199 = vmatprep.mubr.bf16.mxu0 0
  %1200 = vmatmul.mubr.bf16.gmra.mxu0 %v303
  %v1201 = vpop.f32.mrf.mxu0
  %v1202 = vadd.f32 %v985, %v1201
  %v1203 = vpop.f32.mrf.mxu0
  %v1204 = vpop.f32.mrf.mxu0
  %v1205 = vadd.f32 %v985, %v1204
  %v1206 = vpop.f32.mrf.mxu0
  %1207 = vmatprep.mubr.bf16.mxu0 0
  %1208 = vmatmul.mubr.bf16.gmra.mxu0 %v306
  %v1209 = vpop.f32.mrf.mxu0
  %v1210 = vadd.f32 %v985, %v1209
  %v1211 = vpop.f32.mrf.mxu0
  %v1212 = vpop.f32.mrf.mxu0
  %v1213 = vadd.f32 %v985, %v1212
  %v1214 = vpop.f32.mrf.mxu0
  %1215 = vmatprep.mubr.bf16.mxu0 0
  %1216 = vmatmul.mubr.bf16.gmra.mxu0 %v309
  %v1217 = vpop.f32.mrf.mxu0
  %v1218 = vadd.f32 %v985, %v1217
  %v1219 = vpop.f32.mrf.mxu0
  %v1220 = vpop.f32.mrf.mxu0
  %v1221 = vadd.f32 %v985, %v1220
  %v1222 = vpop.f32.mrf.mxu0
  %1223 = vmatprep.mubr.bf16.mxu0 0
  %1224 = vmatmul.mubr.bf16.gmra.mxu0 %v312
  %v1225 = vpop.f32.mrf.mxu0
  %v1226 = vadd.f32 %v985, %v1225
  %v1227 = vpop.f32.mrf.mxu0
  %v1228 = vpop.f32.mrf.mxu0
  %v1229 = vadd.f32 %v985, %v1228
  %v1230 = vpop.f32.mrf.mxu0
  %1231 = vmatprep.mubr.bf16.mxu0 0
  %1232 = vmatmul.mubr.bf16.gmra.mxu0 %v315
  %v1233 = vpop.f32.mrf.mxu0
  %v1234 = vadd.f32 %v985, %v1233
  %v1235 = vpop.f32.mrf.mxu0
  %v1236 = vpop.f32.mrf.mxu0
  %v1237 = vadd.f32 %v985, %v1236
  %v1238 = vpop.f32.mrf.mxu0
  %1239 = vmatprep.mubr.bf16.mxu0 0
  %1240 = vmatmul.mubr.bf16.gmra.mxu0 %v318
  %v1241 = vpop.f32.mrf.mxu0
  %v1242 = vadd.f32 %v985, %v1241
  %v1243 = vpop.f32.mrf.mxu0
  %v1244 = vpop.f32.mrf.mxu0
  %v1245 = vadd.f32 %v985, %v1244
  %v1246 = vpop.f32.mrf.mxu0
  %1247 = vmatprep.mubr.bf16.mxu0 0
  %1248 = vmatmul.mubr.bf16.gmra.mxu0 %v321
  %v1249 = vpop.f32.mrf.mxu0
  %v1250 = vadd.f32 %v985, %v1249
  %v1251 = vpop.f32.mrf.mxu0
  %v1252 = vpop.f32.mrf.mxu0
  %v1253 = vadd.f32 %v985, %v1252
  %v1254 = vpop.f32.mrf.mxu0
  %1255 = vmatprep.mubr.bf16.mxu0 0
  %1256 = vmatmul.mubr.bf16.gmra.mxu0 %v324
  %v1257 = vpop.f32.mrf.mxu0
  %v1258 = vadd.f32 %v985, %v1257
  %v1259 = vpop.f32.mrf.mxu0
  %v1260 = vpop.f32.mrf.mxu0
  %v1261 = vadd.f32 %v985, %v1260
  %v1262 = vpop.f32.mrf.mxu0
  %1263 = vmatprep.mubr.bf16.mxu0 0
  %1264 = vmatmul.mubr.bf16.gmra.mxu0 %v327
  %v1265 = vpop.f32.mrf.mxu0
  %v1266 = vadd.f32 %v985, %v1265
  %v1267 = vpop.f32.mrf.mxu0
  %v1268 = vpop.f32.mrf.mxu0
  %v1269 = vadd.f32 %v985, %v1268
  %v1270 = vpop.f32.mrf.mxu0
  %1271 = vmatprep.mubr.bf16.mxu0 0
  %1272 = vmatmul.mubr.bf16.gmra.mxu0 %v330
  %v1273 = vpop.f32.mrf.mxu0
  %v1274 = vadd.f32 %v985, %v1273
  %v1275 = vpop.f32.mrf.mxu0
  %v1276 = vpop.f32.mrf.mxu0
  %v1277 = vadd.f32 %v985, %v1276
  %v1278 = vpop.f32.mrf.mxu0
  %1279 = vmatprep.mubr.bf16.mxu0 0
  %1280 = vmatmul.mubr.bf16.gmra.mxu0 %v333
  %v1281 = vpop.f32.mrf.mxu0
  %v1282 = vadd.f32 %v985, %v1281
  %v1283 = vpop.f32.mrf.mxu0
  %v1284 = vpop.f32.mrf.mxu0
  %v1285 = vadd.f32 %v985, %v1284
  %v1286 = vpop.f32.mrf.mxu0
  %1287 = vmatprep.mubr.bf16.mxu0 0
  %1288 = vmatmul.mubr.bf16.gmra.mxu0 %v336
  %v1289 = vpop.f32.mrf.mxu0
  %v1290 = vadd.f32 %v985, %v1289
  %v1291 = vpop.f32.mrf.mxu0
  %v1292 = vpop.f32.mrf.mxu0
  %v1293 = vadd.f32 %v985, %v1292
  %v1294 = vpop.f32.mrf.mxu0
  %1295 = vmatprep.mubr.bf16.mxu0 0
  %1296 = vmatmul.mubr.bf16.gmra.mxu0 %v339
  %v1297 = vpop.f32.mrf.mxu0
  %v1298 = vadd.f32 %v985, %v1297
  %v1299 = vpop.f32.mrf.mxu0
  %v1300 = vpop.f32.mrf.mxu0
  %v1301 = vadd.f32 %v985, %v1300
  %v1302 = vpop.f32.mrf.mxu0
  %1303 = vmatprep.mubr.bf16.mxu0 0
  %1304 = vmatmul.mubr.bf16.gmra.mxu0 %v342
  %v1305 = vpop.f32.mrf.mxu0
  %v1306 = vadd.f32 %v985, %v1305
  %v1307 = vpop.f32.mrf.mxu0
  %v1308 = vpop.f32.mrf.mxu0
  %v1309 = vadd.f32 %v985, %v1308
  %v1310 = vpop.f32.mrf.mxu0
  %1311 = vmatprep.mubr.bf16.mxu0 0
  %1312 = vmatmul.mubr.bf16.gmra.mxu0 %v345
  %v1313 = vpop.f32.mrf.mxu0
  %v1314 = vadd.f32 %v985, %v1313
  %v1315 = vpop.f32.mrf.mxu0
  %v1316 = vpop.f32.mrf.mxu0
  %v1317 = vadd.f32 %v985, %v1316
  %v1318 = vpop.f32.mrf.mxu0
  %1319 = vmatprep.mubr.bf16.mxu0 0
  %1320 = vmatmul.mubr.bf16.gmra.mxu0 %v348
  %v1321 = vpop.f32.mrf.mxu0
  %v1322 = vadd.f32 %v985, %v1321
  %v1323 = vpop.f32.mrf.mxu0
  %v1324 = vpop.f32.mrf.mxu0
  %v1325 = vadd.f32 %v985, %v1324
  %v1326 = vpop.f32.mrf.mxu0
  %1327 = vmatprep.mubr.bf16.mxu0 0
  %1328 = vmatmul.mubr.bf16.gmra.mxu0 %v351
  %v1329 = vpop.f32.mrf.mxu0
  %v1330 = vadd.f32 %v985, %v1329
  %v1331 = vpop.f32.mrf.mxu0
  %v1332 = vpop.f32.mrf.mxu0
  %v1333 = vadd.f32 %v985, %v1332
  %v1334 = vpop.f32.mrf.mxu0
  %1335 = vmatprep.mubr.bf16.mxu0 0
  %1336 = vmatmul.mubr.bf16.gmra.mxu0 %v354
  %v1337 = vpop.f32.mrf.mxu0
  %v1338 = vadd.f32 %v985, %v1337
  %v1339 = vpop.f32.mrf.mxu0
  %v1340 = vpop.f32.mrf.mxu0
  %v1341 = vadd.f32 %v985, %v1340
  %v1342 = vpop.f32.mrf.mxu0
  %1343 = vmatprep.mubr.bf16.mxu0 0
  %1344 = vmatmul.mubr.bf16.gmra.mxu0 %v357
  %v1345 = vpop.f32.mrf.mxu0
  %v1346 = vadd.f32 %v985, %v1345
  %v1347 = vpop.f32.mrf.mxu0
  %v1348 = vpop.f32.mrf.mxu0
  %v1349 = vadd.f32 %v985, %v1348
  %v1350 = vpop.f32.mrf.mxu0
  %1351 = vmatprep.mubr.bf16.mxu0 0
  %1352 = vmatmul.mubr.bf16.gmra.mxu0 %v360
  %v1353 = vpop.f32.mrf.mxu0
  %v1354 = vadd.f32 %v985, %v1353
  %v1355 = vpop.f32.mrf.mxu0
  %v1356 = vpop.f32.mrf.mxu0
  %v1357 = vadd.f32 %v985, %v1356
  %v1358 = vpop.f32.mrf.mxu0
  %1359 = vmatprep.mubr.bf16.mxu0 0
  %1360 = vmatmul.mubr.bf16.gmra.mxu0 %v363
  %v1361 = vpop.f32.mrf.mxu0
  %v1362 = vadd.f32 %v985, %v1361
  %v1363 = vpop.f32.mrf.mxu0
  %v1364 = vpop.f32.mrf.mxu0
  %v1365 = vadd.f32 %v985, %v1364
  %v1366 = vpop.f32.mrf.mxu0
  %1367 = vmatprep.mubr.bf16.mxu0 0
  %1368 = vmatmul.mubr.bf16.gmra.mxu0 %v366
  %v1369 = vpop.f32.mrf.mxu0
  %v1370 = vadd.f32 %v985, %v1369
  %v1371 = vpop.f32.mrf.mxu0
  %v1372 = vpop.f32.mrf.mxu0
  %v1373 = vadd.f32 %v985, %v1372
  %v1374 = vpop.f32.mrf.mxu0
  %1375 = vmatprep.mubr.bf16.mxu0 0
  %1376 = vmatmul.mubr.bf16.gmra.mxu0 %v369
  %v1377 = vpop.f32.mrf.mxu0
  %v1378 = vadd.f32 %v985, %v1377
  %v1379 = vpop.f32.mrf.mxu0
  %v1380 = vpop.f32.mrf.mxu0
  %v1381 = vadd.f32 %v985, %v1380
  %v1382 = vpop.f32.mrf.mxu0
  %1383 = vmatprep.mubr.bf16.mxu0 0
  %1384 = vmatmul.mubr.bf16.gmra.mxu0 %v372
  %v1385 = vpop.f32.mrf.mxu0
  %v1386 = vadd.f32 %v985, %v1385
  %v1387 = vpop.f32.mrf.mxu0
  %v1388 = vpop.f32.mrf.mxu0
  %v1389 = vadd.f32 %v985, %v1388
  %v1390 = vpop.f32.mrf.mxu0
  %1391 = vmatprep.mubr.bf16.mxu0 0
  %1392 = vmatmul.mubr.bf16.gmra.mxu0 %v375
  %v1393 = vpop.f32.mrf.mxu0
  %v1394 = vadd.f32 %v985, %v1393
  %v1395 = vpop.f32.mrf.mxu0
  %v1396 = vpop.f32.mrf.mxu0
  %v1397 = vadd.f32 %v985, %v1396
  %v1398 = vpop.f32.mrf.mxu0
  %1399 = vmatprep.mubr.bf16.mxu0 0
  %1400 = vmatmul.mubr.bf16.gmra.mxu0 %v378
  %v1401 = vpop.f32.mrf.mxu0
  %v1402 = vadd.f32 %v985, %v1401
  %v1403 = vpop.f32.mrf.mxu0
  %v1404 = vpop.f32.mrf.mxu0
  %v1405 = vadd.f32 %v985, %v1404
  %v1406 = vpop.f32.mrf.mxu0
  %1407 = vmatprep.mubr.bf16.mxu0 0
  %1408 = vmatmul.mubr.bf16.gmra.mxu0 %v381
  %v1409 = vpop.f32.mrf.mxu0
  %v1410 = vadd.f32 %v985, %v1409
  %v1411 = vpop.f32.mrf.mxu0
  %v1412 = vpop.f32.mrf.mxu0
  %v1413 = vadd.f32 %v985, %v1412
  %v1414 = vpop.f32.mrf.mxu0
  %1415 = vmatprep.mubr.bf16.mxu0 0
  %1416 = vmatmul.mubr.bf16.gmra.mxu0 %v384
  %v1417 = vpop.f32.mrf.mxu0
  %v1418 = vadd.f32 %v985, %v1417
  %v1419 = vpop.f32.mrf.mxu0
  %v1420 = vpop.f32.mrf.mxu0
  %v1421 = vadd.f32 %v985, %v1420
  %v1422 = vpop.f32.mrf.mxu0
  %1423 = vmatprep.mubr.bf16.mxu0 0
  %1424 = vmatmul.mubr.bf16.gmra.mxu0 %v387
  %v1425 = vpop.f32.mrf.mxu0
  %v1426 = vadd.f32 %v985, %v1425
  %v1427 = vpop.f32.mrf.mxu0
  %v1428 = vpop.f32.mrf.mxu0
  %v1429 = vadd.f32 %v985, %v1428
  %v1430 = vpop.f32.mrf.mxu0
  %1431 = vmatprep.mubr.bf16.mxu0 0
  %1432 = vmatmul.mubr.bf16.gmra.mxu0 %v390
  %v1433 = vpop.f32.mrf.mxu0
  %v1434 = vadd.f32 %v985, %v1433
  %v1435 = vpop.f32.mrf.mxu0
  %v1436 = vpop.f32.mrf.mxu0
  %v1437 = vadd.f32 %v985, %v1436
  %v1438 = vpop.f32.mrf.mxu0
  %1439 = vmatprep.mubr.bf16.mxu0 0
  %1440 = vmatmul.mubr.bf16.gmra.mxu0 %v393
  %v1441 = vpop.f32.mrf.mxu0
  %v1442 = vadd.f32 %v985, %v1441
  %v1443 = vpop.f32.mrf.mxu0
  %v1444 = vpop.f32.mrf.mxu0
  %v1445 = vadd.f32 %v985, %v1444
  %v1446 = vpop.f32.mrf.mxu0
  %1447 = vmatprep.mubr.bf16.mxu0 0
  %1448 = vmatmul.mubr.bf16.gmra.mxu0 %v396
  %v1449 = vpop.f32.mrf.mxu0
  %v1450 = vadd.f32 %v985, %v1449
  %v1451 = vpop.f32.mrf.mxu0
  %v1452 = vpop.f32.mrf.mxu0
  %v1453 = vadd.f32 %v985, %v1452
  %v1454 = vpop.f32.mrf.mxu0
  %1455 = vmatprep.mubr.bf16.mxu0 0
  %1456 = vmatmul.mubr.bf16.gmra.mxu0 %v399
  %v1457 = vpop.f32.mrf.mxu0
  %v1458 = vadd.f32 %v985, %v1457
  %v1459 = vpop.f32.mrf.mxu0
  %v1460 = vpop.f32.mrf.mxu0
  %v1461 = vadd.f32 %v985, %v1460
  %v1462 = vpop.f32.mrf.mxu0
  %1463 = vmatprep.mubr.bf16.mxu0 0
  %1464 = vmatmul.mubr.bf16.gmra.mxu0 %v402
  %v1465 = vpop.f32.mrf.mxu0
  %v1466 = vadd.f32 %v985, %v1465
  %v1467 = vpop.f32.mrf.mxu0
  %v1468 = vpop.f32.mrf.mxu0
  %v1469 = vadd.f32 %v985, %v1468
  %v1470 = vpop.f32.mrf.mxu0
  %1471 = vmatprep.mubr.bf16.mxu0 0
  %1472 = vmatmul.mubr.bf16.gmra.mxu0 %v405
  %v1473 = vpop.f32.mrf.mxu0
  %v1474 = vadd.f32 %v985, %v1473
  %v1475 = vpop.f32.mrf.mxu0
  %v1476 = vpop.f32.mrf.mxu0
  %v1477 = vadd.f32 %v985, %v1476
  %v1478 = vpop.f32.mrf.mxu0
  %1479 = vmatprep.mubr.bf16.mxu0 0
  %1480 = vmatmul.mubr.bf16.gmra.mxu0 %v408
  %v1481 = vpop.f32.mrf.mxu0
  %v1482 = vadd.f32 %v985, %v1481
  %v1483 = vpop.f32.mrf.mxu0
  %v1484 = vpop.f32.mrf.mxu0
  %v1485 = vadd.f32 %v985, %v1484
  %v1486 = vpop.f32.mrf.mxu0
  %1487 = vmatprep.mubr.bf16.mxu0 0
  %1488 = vmatmul.mubr.bf16.gmra.mxu0 %v411
  %v1489 = vpop.f32.mrf.mxu0
  %v1490 = vadd.f32 %v985, %v1489
  %v1491 = vpop.f32.mrf.mxu0
  %v1492 = vpop.f32.mrf.mxu0
  %v1493 = vadd.f32 %v985, %v1492
  %v1494 = vpop.f32.mrf.mxu0
  %1495 = vmatprep.mubr.bf16.mxu0 0
  %1496 = vmatmul.mubr.bf16.gmra.mxu0 %v414
  %v1497 = vpop.f32.mrf.mxu0
  %v1498 = vadd.f32 %v985, %v1497
  %v1499 = vpop.f32.mrf.mxu0
  %v1500 = vpop.f32.mrf.mxu0
  %v1501 = vadd.f32 %v985, %v1500
  %v1502 = vpop.f32.mrf.mxu0
  %1503 = vmatprep.mubr.bf16.mxu0 0
  %1504 = vmatmul.mubr.bf16.gmra.mxu0 %v417
  %v1505 = vpop.f32.mrf.mxu0
  %v1506 = vadd.f32 %v985, %v1505
  %v1507 = vpop.f32.mrf.mxu0
  %v1508 = vpop.f32.mrf.mxu0
  %v1509 = vadd.f32 %v985, %v1508
  %v1510 = vpop.f32.mrf.mxu0
  %1511 = vmatprep.mubr.bf16.mxu0 0
  %1512 = vmatmul.mubr.bf16.gmra.mxu0 %v420
  %v1513 = vpop.f32.mrf.mxu0
  %v1514 = vadd.f32 %v985, %v1513
  %v1515 = vpop.f32.mrf.mxu0
  %v1516 = vpop.f32.mrf.mxu0
  %v1517 = vadd.f32 %v985, %v1516
  %v1518 = vpop.f32.mrf.mxu0
  %1519 = vmatprep.mubr.bf16.mxu0 0
  %1520 = vmatmul.mubr.bf16.gmra.mxu0 %v423
  %v1521 = vpop.f32.mrf.mxu0
  %v1522 = vadd.f32 %v985, %v1521
  %v1523 = vpop.f32.mrf.mxu0
  %v1524 = vpop.f32.mrf.mxu0
  %v1525 = vadd.f32 %v985, %v1524
  %v1526 = vpop.f32.mrf.mxu0
  %1527 = vmatprep.mubr.bf16.mxu0 0
  %1528 = vmatmul.mubr.bf16.gmra.mxu0 %v426
  %v1529 = vpop.f32.mrf.mxu0
  %v1530 = vadd.f32 %v985, %v1529
  %v1531 = vpop.f32.mrf.mxu0
  %v1532 = vpop.f32.mrf.mxu0
  %v1533 = vadd.f32 %v985, %v1532
  %v1534 = vpop.f32.mrf.mxu0
  %1535 = vmatprep.mubr.bf16.mxu0 0
  %1536 = vmatmul.mubr.bf16.gmra.mxu0 %v429
  %v1537 = vpop.f32.mrf.mxu0
  %v1538 = vadd.f32 %v985, %v1537
  %v1539 = vpop.f32.mrf.mxu0
  %v1540 = vpop.f32.mrf.mxu0
  %v1541 = vadd.f32 %v985, %v1540
  %v1542 = vpop.f32.mrf.mxu0
  %1543 = vdwg.mxu0
  %v1544 = vpack.c.bf16 %v469, %v466
  %v1545 = vpack.c.bf16 %v477, %v474
  %v1546 = vpack.c.bf16 %v485, %v482
  %v1547 = vpack.c.bf16 %v493, %v490
  %v1548 = vpack.c.bf16 %v501, %v498
  %v1549 = vpack.c.bf16 %v509, %v506
  %v1550 = vpack.c.bf16 %v517, %v514
  %v1551 = vpack.c.bf16 %v525, %v522
  %v1552 = vpack.c.bf16 %v533, %v530
  %v1553 = vpack.c.bf16 %v541, %v538
  %v1554 = vpack.c.bf16 %v549, %v546
  %v1555 = vpack.c.bf16 %v557, %v554
  %v1556 = vpack.c.bf16 %v565, %v562
  %v1557 = vpack.c.bf16 %v573, %v570
  %v1558 = vpack.c.bf16 %v581, %v578
  %v1559 = vpack.c.bf16 %v589, %v586
  %v1560 = vpack.c.bf16 %v597, %v594
  %v1561 = vpack.c.bf16 %v605, %v602
  %v1562 = vpack.c.bf16 %v613, %v610
  %v1563 = vpack.c.bf16 %v621, %v618
  %v1564 = vpack.c.bf16 %v629, %v626
  %v1565 = vpack.c.bf16 %v637, %v634
  %v1566 = vpack.c.bf16 %v645, %v642
  %v1567 = vpack.c.bf16 %v653, %v650
  %v1568 = vpack.c.bf16 %v661, %v658
  %v1569 = vpack.c.bf16 %v669, %v666
  %v1570 = vpack.c.bf16 %v677, %v674
  %v1571 = vpack.c.bf16 %v685, %v682
  %v1572 = vpack.c.bf16 %v693, %v690
  %v1573 = vpack.c.bf16 %v701, %v698
  %v1574 = vpack.c.bf16 %v709, %v706
  %v1575 = vpack.c.bf16 %v717, %v714
  %v1576 = vpack.c.bf16 %v725, %v722
  %v1577 = vpack.c.bf16 %v733, %v730
  %v1578 = vpack.c.bf16 %v741, %v738
  %v1579 = vpack.c.bf16 %v749, %v746
  %v1580 = vpack.c.bf16 %v757, %v754
  %v1581 = vpack.c.bf16 %v765, %v762
  %v1582 = vpack.c.bf16 %v773, %v770
  %v1583 = vpack.c.bf16 %v781, %v778
  %v1584 = vpack.c.bf16 %v789, %v786
  %v1585 = vpack.c.bf16 %v797, %v794
  %v1586 = vpack.c.bf16 %v805, %v802
  %v1587 = vpack.c.bf16 %v813, %v810
  %v1588 = vpack.c.bf16 %v821, %v818
  %v1589 = vpack.c.bf16 %v829, %v826
  %v1590 = vpack.c.bf16 %v837, %v834
  %v1591 = vpack.c.bf16 %v845, %v842
  %v1592 = vpack.c.bf16 %v853, %v850
  %v1593 = vpack.c.bf16 %v861, %v858
  %v1594 = vpack.c.bf16 %v869, %v866
  %v1595 = vpack.c.bf16 %v877, %v874
  %v1596 = vpack.c.bf16 %v885, %v882
  %v1597 = vpack.c.bf16 %v893, %v890
  %v1598 = vpack.c.bf16 %v901, %v898
  %v1599 = vpack.c.bf16 %v909, %v906
  %v1600 = vpack.c.bf16 %v917, %v914
  %v1601 = vpack.c.bf16 %v925, %v922
  %v1602 = vpack.c.bf16 %v933, %v930
  %v1603 = vpack.c.bf16 %v941, %v938
  %v1604 = vpack.c.bf16 %v949, %v946
  %v1605 = vpack.c.bf16 %v957, %v954
  %v1606 = vpack.c.bf16 %v965, %v962
  %v1607 = vpack.c.bf16 %v973, %v970
  %v1672 = vunpack.c.l.b16 %v1544
  %v1673 = vunpack.c.h.b16 %v1544
  %v1674 = vunpack.c.l.b16 %v1545
  %v1675 = vunpack.c.h.b16 %v1545
  %v1676 = vunpack.c.l.b16 %v1546
  %v1677 = vunpack.c.h.b16 %v1546
  %v1678 = vunpack.c.l.b16 %v1547
  %v1679 = vunpack.c.h.b16 %v1547
  %v1680 = vunpack.c.l.b16 %v1548
  %v1681 = vunpack.c.h.b16 %v1548
  %v1682 = vunpack.c.l.b16 %v1549
  %v1683 = vunpack.c.h.b16 %v1549
  %v1684 = vunpack.c.l.b16 %v1550
  %v1685 = vunpack.c.h.b16 %v1550
  %v1686 = vunpack.c.l.b16 %v1551
  %v1687 = vunpack.c.h.b16 %v1551
  %v1688 = vunpack.c.l.b16 %v1552
  %v1689 = vunpack.c.h.b16 %v1552
  %v1690 = vunpack.c.l.b16 %v1553
  %v1691 = vunpack.c.h.b16 %v1553
  %v1692 = vunpack.c.l.b16 %v1554
  %v1693 = vunpack.c.h.b16 %v1554
  %v1694 = vunpack.c.l.b16 %v1555
  %v1695 = vunpack.c.h.b16 %v1555
  %v1696 = vunpack.c.l.b16 %v1556
  %v1697 = vunpack.c.h.b16 %v1556
  %v1698 = vunpack.c.l.b16 %v1557
  %v1699 = vunpack.c.h.b16 %v1557
  %v1700 = vunpack.c.l.b16 %v1558
  %v1701 = vunpack.c.h.b16 %v1558
  %v1702 = vunpack.c.l.b16 %v1559
  %v1703 = vunpack.c.h.b16 %v1559
  %v1704 = vunpack.c.l.b16 %v1560
  %v1705 = vunpack.c.h.b16 %v1560
  %v1706 = vunpack.c.l.b16 %v1561
  %v1707 = vunpack.c.h.b16 %v1561
  %v1708 = vunpack.c.l.b16 %v1562
  %v1709 = vunpack.c.h.b16 %v1562
  %v1710 = vunpack.c.l.b16 %v1563
  %v1711 = vunpack.c.h.b16 %v1563
  %v1712 = vunpack.c.l.b16 %v1564
  %v1713 = vunpack.c.h.b16 %v1564
  %v1714 = vunpack.c.l.b16 %v1565
  %v1715 = vunpack.c.h.b16 %v1565
  %v1716 = vunpack.c.l.b16 %v1566
  %v1717 = vunpack.c.h.b16 %v1566
  %v1718 = vunpack.c.l.b16 %v1567
  %v1719 = vunpack.c.h.b16 %v1567
  %v1720 = vunpack.c.l.b16 %v1568
  %v1721 = vunpack.c.h.b16 %v1568
  %v1722 = vunpack.c.l.b16 %v1569
  %v1723 = vunpack.c.h.b16 %v1569
  %v1724 = vunpack.c.l.b16 %v1570
  %v1725 = vunpack.c.h.b16 %v1570
  %v1726 = vunpack.c.l.b16 %v1571
  %v1727 = vunpack.c.h.b16 %v1571
  %v1728 = vunpack.c.l.b16 %v1572
  %v1729 = vunpack.c.h.b16 %v1572
  %v1730 = vunpack.c.l.b16 %v1573
  %v1731 = vunpack.c.h.b16 %v1573
  %v1732 = vunpack.c.l.b16 %v1574
  %v1733 = vunpack.c.h.b16 %v1574
  %v1734 = vunpack.c.l.b16 %v1575
  %v1735 = vunpack.c.h.b16 %v1575
  %v1736 = vunpack.c.l.b16 %v1576
  %v1737 = vunpack.c.h.b16 %v1576
  %v1738 = vunpack.c.l.b16 %v1577
  %v1739 = vunpack.c.h.b16 %v1577
  %v1740 = vunpack.c.l.b16 %v1578
  %v1741 = vunpack.c.h.b16 %v1578
  %v1742 = vunpack.c.l.b16 %v1579
  %v1743 = vunpack.c.h.b16 %v1579
  %v1744 = vunpack.c.l.b16 %v1580
  %v1745 = vunpack.c.h.b16 %v1580
  %v1746 = vunpack.c.l.b16 %v1581
  %v1747 = vunpack.c.h.b16 %v1581
  %v1748 = vunpack.c.l.b16 %v1582
  %v1749 = vunpack.c.h.b16 %v1582
  %v1750 = vunpack.c.l.b16 %v1583
  %v1751 = vunpack.c.h.b16 %v1583
  %v1752 = vunpack.c.l.b16 %v1584
  %v1753 = vunpack.c.h.b16 %v1584
  %v1754 = vunpack.c.l.b16 %v1585
  %v1755 = vunpack.c.h.b16 %v1585
  %v1756 = vunpack.c.l.b16 %v1586
  %v1757 = vunpack.c.h.b16 %v1586
  %v1758 = vunpack.c.l.b16 %v1587
  %v1759 = vunpack.c.h.b16 %v1587
  %v1760 = vunpack.c.l.b16 %v1588
  %v1761 = vunpack.c.h.b16 %v1588
  %v1762 = vunpack.c.l.b16 %v1589
  %v1763 = vunpack.c.h.b16 %v1589
  %v1764 = vunpack.c.l.b16 %v1590
  %v1765 = vunpack.c.h.b16 %v1590
  %v1766 = vunpack.c.l.b16 %v1591
  %v1767 = vunpack.c.h.b16 %v1591
  %v1768 = vunpack.c.l.b16 %v1592
  %v1769 = vunpack.c.h.b16 %v1592
  %v1770 = vunpack.c.l.b16 %v1593
  %v1771 = vunpack.c.h.b16 %v1593
  %v1772 = vunpack.c.l.b16 %v1594
  %v1773 = vunpack.c.h.b16 %v1594
  %v1774 = vunpack.c.l.b16 %v1595
  %v1775 = vunpack.c.h.b16 %v1595
  %v1776 = vunpack.c.l.b16 %v1596
  %v1777 = vunpack.c.h.b16 %v1596
  %v1778 = vunpack.c.l.b16 %v1597
  %v1779 = vunpack.c.h.b16 %v1597
  %v1780 = vunpack.c.l.b16 %v1598
  %v1781 = vunpack.c.h.b16 %v1598
  %v1782 = vunpack.c.l.b16 %v1599
  %v1783 = vunpack.c.h.b16 %v1599
  %v1784 = vunpack.c.l.b16 %v1600
  %v1785 = vunpack.c.h.b16 %v1600
  %v1786 = vunpack.c.l.b16 %v1601
  %v1787 = vunpack.c.h.b16 %v1601
  %v1788 = vunpack.c.l.b16 %v1602
  %v1789 = vunpack.c.h.b16 %v1602
  %v1790 = vunpack.c.l.b16 %v1603
  %v1791 = vunpack.c.h.b16 %v1603
  %v1792 = vunpack.c.l.b16 %v1604
  %v1793 = vunpack.c.h.b16 %v1604
  %v1794 = vunpack.c.l.b16 %v1605
  %v1795 = vunpack.c.h.b16 %v1605
  %v1796 = vunpack.c.l.b16 %v1606
  %v1797 = vunpack.c.h.b16 %v1606
  %v1798 = vunpack.c.l.b16 %v1607
  %v1799 = vunpack.c.h.b16 %v1607
  %v1800 = vpack.c.b16 %v1672, %v1672
  %v1801 = vpack.c.b16 %v1673, %v1673
  %v1802 = vpack.c.b16 %v1674, %v1674
  %v1803 = vpack.c.b16 %v1675, %v1675
  %v1804 = vpack.c.b16 %v1676, %v1676
  %v1805 = vpack.c.b16 %v1677, %v1677
  %v1806 = vpack.c.b16 %v1678, %v1678
  %v1807 = vpack.c.b16 %v1679, %v1679
  %v1808 = vpack.c.b16 %v1680, %v1680
  %v1809 = vpack.c.b16 %v1681, %v1681
  %v1810 = vpack.c.b16 %v1682, %v1682
  %v1811 = vpack.c.b16 %v1683, %v1683
  %v1812 = vpack.c.b16 %v1684, %v1684
  %v1813 = vpack.c.b16 %v1685, %v1685
  %v1814 = vpack.c.b16 %v1686, %v1686
  %v1815 = vpack.c.b16 %v1687, %v1687
  %v1816 = vpack.c.b16 %v1688, %v1688
  %v1817 = vpack.c.b16 %v1689, %v1689
  %v1818 = vpack.c.b16 %v1690, %v1690
  %v1819 = vpack.c.b16 %v1691, %v1691
  %v1820 = vpack.c.b16 %v1692, %v1692
  %v1821 = vpack.c.b16 %v1693, %v1693
  %v1822 = vpack.c.b16 %v1694, %v1694
  %v1823 = vpack.c.b16 %v1695, %v1695
  %v1824 = vpack.c.b16 %v1696, %v1696
  %v1825 = vpack.c.b16 %v1697, %v1697
  %v1826 = vpack.c.b16 %v1698, %v1698
  %v1827 = vpack.c.b16 %v1699, %v1699
  %v1828 = vpack.c.b16 %v1700, %v1700
  %v1829 = vpack.c.b16 %v1701, %v1701
  %v1830 = vpack.c.b16 %v1702, %v1702
  %v1831 = vpack.c.b16 %v1703, %v1703
  %v1832 = vpack.c.b16 %v1704, %v1704
  %v1833 = vpack.c.b16 %v1705, %v1705
  %v1834 = vpack.c.b16 %v1706, %v1706
  %v1835 = vpack.c.b16 %v1707, %v1707
  %v1836 = vpack.c.b16 %v1708, %v1708
  %v1837 = vpack.c.b16 %v1709, %v1709
  %v1838 = vpack.c.b16 %v1710, %v1710
  %v1839 = vpack.c.b16 %v1711, %v1711
  %v1840 = vpack.c.b16 %v1712, %v1712
  %v1841 = vpack.c.b16 %v1713, %v1713
  %v1842 = vpack.c.b16 %v1714, %v1714
  %v1843 = vpack.c.b16 %v1715, %v1715
  %v1844 = vpack.c.b16 %v1716, %v1716
  %v1845 = vpack.c.b16 %v1717, %v1717
  %v1846 = vpack.c.b16 %v1718, %v1718
  %v1847 = vpack.c.b16 %v1719, %v1719
  %v1848 = vpack.c.b16 %v1720, %v1720
  %v1849 = vpack.c.b16 %v1721, %v1721
  %v1850 = vpack.c.b16 %v1722, %v1722
  %v1851 = vpack.c.b16 %v1723, %v1723
  %v1852 = vpack.c.b16 %v1724, %v1724
  %v1853 = vpack.c.b16 %v1725, %v1725
  %v1854 = vpack.c.b16 %v1726, %v1726
  %v1855 = vpack.c.b16 %v1727, %v1727
  %v1856 = vpack.c.b16 %v1728, %v1728
  %v1857 = vpack.c.b16 %v1729, %v1729
  %v1858 = vpack.c.b16 %v1730, %v1730
  %v1859 = vpack.c.b16 %v1731, %v1731
  %v1860 = vpack.c.b16 %v1732, %v1732
  %v1861 = vpack.c.b16 %v1733, %v1733
  %v1862 = vpack.c.b16 %v1734, %v1734
  %v1863 = vpack.c.b16 %v1735, %v1735
  %v1864 = vpack.c.b16 %v1736, %v1736
  %v1865 = vpack.c.b16 %v1737, %v1737
  %v1866 = vpack.c.b16 %v1738, %v1738
  %v1867 = vpack.c.b16 %v1739, %v1739
  %v1868 = vpack.c.b16 %v1740, %v1740
  %v1869 = vpack.c.b16 %v1741, %v1741
  %v1870 = vpack.c.b16 %v1742, %v1742
  %v1871 = vpack.c.b16 %v1743, %v1743
  %v1872 = vpack.c.b16 %v1744, %v1744
  %v1873 = vpack.c.b16 %v1745, %v1745
  %v1874 = vpack.c.b16 %v1746, %v1746
  %v1875 = vpack.c.b16 %v1747, %v1747
  %v1876 = vpack.c.b16 %v1748, %v1748
  %v1877 = vpack.c.b16 %v1749, %v1749
  %v1878 = vpack.c.b16 %v1750, %v1750
  %v1879 = vpack.c.b16 %v1751, %v1751
  %v1880 = vpack.c.b16 %v1752, %v1752
  %v1881 = vpack.c.b16 %v1753, %v1753
  %v1882 = vpack.c.b16 %v1754, %v1754
  %v1883 = vpack.c.b16 %v1755, %v1755
  %v1884 = vpack.c.b16 %v1756, %v1756
  %v1885 = vpack.c.b16 %v1757, %v1757
  %v1886 = vpack.c.b16 %v1758, %v1758
  %v1887 = vpack.c.b16 %v1759, %v1759
  %v1888 = vpack.c.b16 %v1760, %v1760
  %v1889 = vpack.c.b16 %v1761, %v1761
  %v1890 = vpack.c.b16 %v1762, %v1762
  %v1891 = vpack.c.b16 %v1763, %v1763
  %v1892 = vpack.c.b16 %v1764, %v1764
  %v1893 = vpack.c.b16 %v1765, %v1765
  %v1894 = vpack.c.b16 %v1766, %v1766
  %v1895 = vpack.c.b16 %v1767, %v1767
  %v1896 = vpack.c.b16 %v1768, %v1768
  %v1897 = vpack.c.b16 %v1769, %v1769
  %v1898 = vpack.c.b16 %v1770, %v1770
  %v1899 = vpack.c.b16 %v1771, %v1771
  %v1900 = vpack.c.b16 %v1772, %v1772
  %v1901 = vpack.c.b16 %v1773, %v1773
  %v1902 = vpack.c.b16 %v1774, %v1774
  %v1903 = vpack.c.b16 %v1775, %v1775
  %v1904 = vpack.c.b16 %v1776, %v1776
  %v1905 = vpack.c.b16 %v1777, %v1777
  %v1906 = vpack.c.b16 %v1778, %v1778
  %v1907 = vpack.c.b16 %v1779, %v1779
  %v1908 = vpack.c.b16 %v1780, %v1780
  %v1909 = vpack.c.b16 %v1781, %v1781
  %v1910 = vpack.c.b16 %v1782, %v1782
  %v1911 = vpack.c.b16 %v1783, %v1783
  %v1912 = vpack.c.b16 %v1784, %v1784
  %v1913 = vpack.c.b16 %v1785, %v1785
  %v1914 = vpack.c.b16 %v1786, %v1786
  %v1915 = vpack.c.b16 %v1787, %v1787
  %v1916 = vpack.c.b16 %v1788, %v1788
  %v1917 = vpack.c.b16 %v1789, %v1789
  %v1918 = vpack.c.b16 %v1790, %v1790
  %v1919 = vpack.c.b16 %v1791, %v1791
  %v1920 = vpack.c.b16 %v1792, %v1792
  %v1921 = vpack.c.b16 %v1793, %v1793
  %v1922 = vpack.c.b16 %v1794, %v1794
  %v1923 = vpack.c.b16 %v1795, %v1795
  %v1924 = vpack.c.b16 %v1796, %v1796
  %v1925 = vpack.c.b16 %v1797, %v1797
  %v1926 = vpack.c.b16 %v1798, %v1798
  %v1927 = vpack.c.b16 %v1799, %v1799
  %vm2056 = vcmask 257024
  %2057 = vst.msk [vmem:[%s5] sm:$0xf] %vm2056, %v1800
  %2058 = vst.msk [vmem:[%s5 + $0x4] sm:$0xf] %vm2056, %v1801
  %2059 = vst.msk [vmem:[%s5 + $0x8] sm:$0xf] %vm2056, %v1802
  %2060 = vst.msk [vmem:[%s5 + $0xc] sm:$0xf] %vm2056, %v1803
  %2061 = vst.msk [vmem:[%s5 + $0x10] sm:$0xf] %vm2056, %v1804
  %2062 = vst.msk [vmem:[%s5 + $0x14] sm:$0xf] %vm2056, %v1805
  %2063 = vst.msk [vmem:[%s5 + $0x18] sm:$0xf] %vm2056, %v1806
  %2064 = vst.msk [vmem:[%s5 + $0x1c] sm:$0xf] %vm2056, %v1807
  %2065 = vst.msk [vmem:[%s5 + $0x20] sm:$0xf] %vm2056, %v1808
  %2066 = vst.msk [vmem:[%s5 + $0x24] sm:$0xf] %vm2056, %v1809
  %2067 = vst.msk [vmem:[%s5 + $0x28] sm:$0xf] %vm2056, %v1810
  %2068 = vst.msk [vmem:[%s5 + $0x2c] sm:$0xf] %vm2056, %v1811
  %2069 = vst.msk [vmem:[%s5 + $0x30] sm:$0xf] %vm2056, %v1812
  %2070 = vst.msk [vmem:[%s5 + $0x34] sm:$0xf] %vm2056, %v1813
  %2071 = vst.msk [vmem:[%s5 + $0x38] sm:$0xf] %vm2056, %v1814
  %2072 = vst.msk [vmem:[%s5 + $0x3c] sm:$0xf] %vm2056, %v1815
  %2073 = vst.msk [vmem:[%s5 + $0x40] sm:$0xf] %vm2056, %v1816
  %2074 = vst.msk [vmem:[%s5 + $0x44] sm:$0xf] %vm2056, %v1817
  %2075 = vst.msk [vmem:[%s5 + $0x48] sm:$0xf] %vm2056, %v1818
  %2076 = vst.msk [vmem:[%s5 + $0x4c] sm:$0xf] %vm2056, %v1819
  %2077 = vst.msk [vmem:[%s5 + $0x50] sm:$0xf] %vm2056, %v1820
  %2078 = vst.msk [vmem:[%s5 + $0x54] sm:$0xf] %vm2056, %v1821
  %2079 = vst.msk [vmem:[%s5 + $0x58] sm:$0xf] %vm2056, %v1822
  %2080 = vst.msk [vmem:[%s5 + $0x5c] sm:$0xf] %vm2056, %v1823
  %2081 = vst.msk [vmem:[%s5 + $0x60] sm:$0xf] %vm2056, %v1824
  %2082 = vst.msk [vmem:[%s5 + $0x64] sm:$0xf] %vm2056, %v1825
  %2083 = vst.msk [vmem:[%s5 + $0x68] sm:$0xf] %vm2056, %v1826
  %2084 = vst.msk [vmem:[%s5 + $0x6c] sm:$0xf] %vm2056, %v1827
  %2085 = vst.msk [vmem:[%s5 + $0x70] sm:$0xf] %vm2056, %v1828
  %2086 = vst.msk [vmem:[%s5 + $0x74] sm:$0xf] %vm2056, %v1829
  %2087 = vst.msk [vmem:[%s5 + $0x78] sm:$0xf] %vm2056, %v1830
  %2088 = vst.msk [vmem:[%s5 + $0x7c] sm:$0xf] %vm2056, %v1831
  %2089 = vst.msk [vmem:[%s5 + $0x80] sm:$0xf] %vm2056, %v1832
  %2090 = vst.msk [vmem:[%s5 + $0x84] sm:$0xf] %vm2056, %v1833
  %2091 = vst.msk [vmem:[%s5 + $0x88] sm:$0xf] %vm2056, %v1834
  %2092 = vst.msk [vmem:[%s5 + $0x8c] sm:$0xf] %vm2056, %v1835
  %2093 = vst.msk [vmem:[%s5 + $0x90] sm:$0xf] %vm2056, %v1836
  %2094 = vst.msk [vmem:[%s5 + $0x94] sm:$0xf] %vm2056, %v1837
  %2095 = vst.msk [vmem:[%s5 + $0x98] sm:$0xf] %vm2056, %v1838
  %2096 = vst.msk [vmem:[%s5 + $0x9c] sm:$0xf] %vm2056, %v1839
  %2097 = vst.msk [vmem:[%s5 + $0xa0] sm:$0xf] %vm2056, %v1840
  %2098 = vst.msk [vmem:[%s5 + $0xa4] sm:$0xf] %vm2056, %v1841
  %2099 = vst.msk [vmem:[%s5 + $0xa8] sm:$0xf] %vm2056, %v1842
  %2100 = vst.msk [vmem:[%s5 + $0xac] sm:$0xf] %vm2056, %v1843
  %2101 = vst.msk [vmem:[%s5 + $0xb0] sm:$0xf] %vm2056, %v1844
  %2102 = vst.msk [vmem:[%s5 + $0xb4] sm:$0xf] %vm2056, %v1845
  %2103 = vst.msk [vmem:[%s5 + $0xb8] sm:$0xf] %vm2056, %v1846
  %2104 = vst.msk [vmem:[%s5 + $0xbc] sm:$0xf] %vm2056, %v1847
  %2105 = vst.msk [vmem:[%s5 + $0xc0] sm:$0xf] %vm2056, %v1848
  %2106 = vst.msk [vmem:[%s5 + $0xc4] sm:$0xf] %vm2056, %v1849
  %2107 = vst.msk [vmem:[%s5 + $0xc8] sm:$0xf] %vm2056, %v1850
  %2108 = vst.msk [vmem:[%s5 + $0xcc] sm:$0xf] %vm2056, %v1851
  %2109 = vst.msk [vmem:[%s5 + $0xd0] sm:$0xf] %vm2056, %v1852
  %2110 = vst.msk [vmem:[%s5 + $0xd4] sm:$0xf] %vm2056, %v1853
  %2111 = vst.msk [vmem:[%s5 + $0xd8] sm:$0xf] %vm2056, %v1854
  %2112 = vst.msk [vmem:[%s5 + $0xdc] sm:$0xf] %vm2056, %v1855
  %2113 = vst.msk [vmem:[%s5 + $0xe0] sm:$0xf] %vm2056, %v1856
  %2114 = vst.msk [vmem:[%s5 + $0xe4] sm:$0xf] %vm2056, %v1857
  %2115 = vst.msk [vmem:[%s5 + $0xe8] sm:$0xf] %vm2056, %v1858
  %2116 = vst.msk [vmem:[%s5 + $0xec] sm:$0xf] %vm2056, %v1859
  %2117 = vst.msk [vmem:[%s5 + $0xf0] sm:$0xf] %vm2056, %v1860
  %2118 = vst.msk [vmem:[%s5 + $0xf4] sm:$0xf] %vm2056, %v1861
  %2119 = vst.msk [vmem:[%s5 + $0xf8] sm:$0xf] %vm2056, %v1862
  %2120 = vst.msk [vmem:[%s5 + $0xfc] sm:$0xf] %vm2056, %v1863
  %2121 = vst.msk [vmem:[%s5 + $0x100] sm:$0xf] %vm2056, %v1864
  %2122 = vst.msk [vmem:[%s5 + $0x104] sm:$0xf] %vm2056, %v1865
  %2123 = vst.msk [vmem:[%s5 + $0x108] sm:$0xf] %vm2056, %v1866
  %2124 = vst.msk [vmem:[%s5 + $0x10c] sm:$0xf] %vm2056, %v1867
  %2125 = vst.msk [vmem:[%s5 + $0x110] sm:$0xf] %vm2056, %v1868
  %2126 = vst.msk [vmem:[%s5 + $0x114] sm:$0xf] %vm2056, %v1869
  %2127 = vst.msk [vmem:[%s5 + $0x118] sm:$0xf] %vm2056, %v1870
  %2128 = vst.msk [vmem:[%s5 + $0x11c] sm:$0xf] %vm2056, %v1871
  %2129 = vst.msk [vmem:[%s5 + $0x120] sm:$0xf] %vm2056, %v1872
  %2130 = vst.msk [vmem:[%s5 + $0x124] sm:$0xf] %vm2056, %v1873
  %2131 = vst.msk [vmem:[%s5 + $0x128] sm:$0xf] %vm2056, %v1874
  %2132 = vst.msk [vmem:[%s5 + $0x12c] sm:$0xf] %vm2056, %v1875
  %2133 = vst.msk [vmem:[%s5 + $0x130] sm:$0xf] %vm2056, %v1876
  %2134 = vst.msk [vmem:[%s5 + $0x134] sm:$0xf] %vm2056, %v1877
  %2135 = vst.msk [vmem:[%s5 + $0x138] sm:$0xf] %vm2056, %v1878
  %2136 = vst.msk [vmem:[%s5 + $0x13c] sm:$0xf] %vm2056, %v1879
  %2137 = vst.msk [vmem:[%s5 + $0x140] sm:$0xf] %vm2056, %v1880
  %2138 = vst.msk [vmem:[%s5 + $0x144] sm:$0xf] %vm2056, %v1881
  %2139 = vst.msk [vmem:[%s5 + $0x148] sm:$0xf] %vm2056, %v1882
  %2140 = vst.msk [vmem:[%s5 + $0x14c] sm:$0xf] %vm2056, %v1883
  %2141 = vst.msk [vmem:[%s5 + $0x150] sm:$0xf] %vm2056, %v1884
  %2142 = vst.msk [vmem:[%s5 + $0x154] sm:$0xf] %vm2056, %v1885
  %2143 = vst.msk [vmem:[%s5 + $0x158] sm:$0xf] %vm2056, %v1886
  %2144 = vst.msk [vmem:[%s5 + $0x15c] sm:$0xf] %vm2056, %v1887
  %2145 = vst.msk [vmem:[%s5 + $0x160] sm:$0xf] %vm2056, %v1888
  %2146 = vst.msk [vmem:[%s5 + $0x164] sm:$0xf] %vm2056, %v1889
  %2147 = vst.msk [vmem:[%s5 + $0x168] sm:$0xf] %vm2056, %v1890
  %2148 = vst.msk [vmem:[%s5 + $0x16c] sm:$0xf] %vm2056, %v1891
  %2149 = vst.msk [vmem:[%s5 + $0x170] sm:$0xf] %vm2056, %v1892
  %2150 = vst.msk [vmem:[%s5 + $0x174] sm:$0xf] %vm2056, %v1893
  %2151 = vst.msk [vmem:[%s5 + $0x178] sm:$0xf] %vm2056, %v1894
  %2152 = vst.msk [vmem:[%s5 + $0x17c] sm:$0xf] %vm2056, %v1895
  %2153 = vst.msk [vmem:[%s5 + $0x180] sm:$0xf] %vm2056, %v1896
  %2154 = vst.msk [vmem:[%s5 + $0x184] sm:$0xf] %vm2056, %v1897
  %2155 = vst.msk [vmem:[%s5 + $0x188] sm:$0xf] %vm2056, %v1898
  %2156 = vst.msk [vmem:[%s5 + $0x18c] sm:$0xf] %vm2056, %v1899
  %2157 = vst.msk [vmem:[%s5 + $0x190] sm:$0xf] %vm2056, %v1900
  %2158 = vst.msk [vmem:[%s5 + $0x194] sm:$0xf] %vm2056, %v1901
  %2159 = vst.msk [vmem:[%s5 + $0x198] sm:$0xf] %vm2056, %v1902
  %2160 = vst.msk [vmem:[%s5 + $0x19c] sm:$0xf] %vm2056, %v1903
  %2161 = vst.msk [vmem:[%s5 + $0x1a0] sm:$0xf] %vm2056, %v1904
  %2162 = vst.msk [vmem:[%s5 + $0x1a4] sm:$0xf] %vm2056, %v1905
  %2163 = vst.msk [vmem:[%s5 + $0x1a8] sm:$0xf] %vm2056, %v1906
  %2164 = vst.msk [vmem:[%s5 + $0x1ac] sm:$0xf] %vm2056, %v1907
  %2165 = vst.msk [vmem:[%s5 + $0x1b0] sm:$0xf] %vm2056, %v1908
  %2166 = vst.msk [vmem:[%s5 + $0x1b4] sm:$0xf] %vm2056, %v1909
  %2167 = vst.msk [vmem:[%s5 + $0x1b8] sm:$0xf] %vm2056, %v1910
  %2168 = vst.msk [vmem:[%s5 + $0x1bc] sm:$0xf] %vm2056, %v1911
  %2169 = vst.msk [vmem:[%s5 + $0x1c0] sm:$0xf] %vm2056, %v1912
  %2170 = vst.msk [vmem:[%s5 + $0x1c4] sm:$0xf] %vm2056, %v1913
  %2171 = vst.msk [vmem:[%s5 + $0x1c8] sm:$0xf] %vm2056, %v1914
  %2172 = vst.msk [vmem:[%s5 + $0x1cc] sm:$0xf] %vm2056, %v1915
  %2173 = vst.msk [vmem:[%s5 + $0x1d0] sm:$0xf] %vm2056, %v1916
  %2174 = vst.msk [vmem:[%s5 + $0x1d4] sm:$0xf] %vm2056, %v1917
  %2175 = vst.msk [vmem:[%s5 + $0x1d8] sm:$0xf] %vm2056, %v1918
  %2176 = vst.msk [vmem:[%s5 + $0x1dc] sm:$0xf] %vm2056, %v1919
  %2177 = vst.msk [vmem:[%s5 + $0x1e0] sm:$0xf] %vm2056, %v1920
  %2178 = vst.msk [vmem:[%s5 + $0x1e4] sm:$0xf] %vm2056, %v1921
  %2179 = vst.msk [vmem:[%s5 + $0x1e8] sm:$0xf] %vm2056, %v1922
  %2180 = vst.msk [vmem:[%s5 + $0x1ec] sm:$0xf] %vm2056, %v1923
  %2181 = vst.msk [vmem:[%s5 + $0x1f0] sm:$0xf] %vm2056, %v1924
  %2182 = vst.msk [vmem:[%s5 + $0x1f4] sm:$0xf] %vm2056, %v1925
  %2183 = vst.msk [vmem:[%s5 + $0x1f8] sm:$0xf] %vm2056, %v1926
  %2184 = vst.msk [vmem:[%s5 + $0x1fc] sm:$0xf] %vm2056, %v1927
  %v2185 = vpack.c.bf16 %v1037, %v1034
  %v2186 = vpack.c.bf16 %v1045, %v1042
  %v2187 = vpack.c.bf16 %v1053, %v1050
  %v2188 = vpack.c.bf16 %v1061, %v1058
  %v2189 = vpack.c.bf16 %v1069, %v1066
  %v2190 = vpack.c.bf16 %v1077, %v1074
  %v2191 = vpack.c.bf16 %v1085, %v1082
  %v2192 = vpack.c.bf16 %v1093, %v1090
  %v2193 = vpack.c.bf16 %v1101, %v1098
  %v2194 = vpack.c.bf16 %v1109, %v1106
  %v2195 = vpack.c.bf16 %v1117, %v1114
  %v2196 = vpack.c.bf16 %v1125, %v1122
  %v2197 = vpack.c.bf16 %v1133, %v1130
  %v2198 = vpack.c.bf16 %v1141, %v1138
  %v2199 = vpack.c.bf16 %v1149, %v1146
  %v2200 = vpack.c.bf16 %v1157, %v1154
  %v2201 = vpack.c.bf16 %v1165, %v1162
  %v2202 = vpack.c.bf16 %v1173, %v1170
  %v2203 = vpack.c.bf16 %v1181, %v1178
  %v2204 = vpack.c.bf16 %v1189, %v1186
  %v2205 = vpack.c.bf16 %v1197, %v1194
  %v2206 = vpack.c.bf16 %v1205, %v1202
  %v2207 = vpack.c.bf16 %v1213, %v1210
  %v2208 = vpack.c.bf16 %v1221, %v1218
  %v2209 = vpack.c.bf16 %v1229, %v1226
  %v2210 = vpack.c.bf16 %v1237, %v1234
  %v2211 = vpack.c.bf16 %v1245, %v1242
  %v2212 = vpack.c.bf16 %v1253, %v1250
  %v2213 = vpack.c.bf16 %v1261, %v1258
  %v2214 = vpack.c.bf16 %v1269, %v1266
  %v2215 = vpack.c.bf16 %v1277, %v1274
  %v2216 = vpack.c.bf16 %v1285, %v1282
  %v2217 = vpack.c.bf16 %v1293, %v1290
  %v2218 = vpack.c.bf16 %v1301, %v1298
  %v2219 = vpack.c.bf16 %v1309, %v1306
  %v2220 = vpack.c.bf16 %v1317, %v1314
  %v2221 = vpack.c.bf16 %v1325, %v1322
  %v2222 = vpack.c.bf16 %v1333, %v1330
  %v2223 = vpack.c.bf16 %v1341, %v1338
  %v2224 = vpack.c.bf16 %v1349, %v1346
  %v2225 = vpack.c.bf16 %v1357, %v1354
  %v2226 = vpack.c.bf16 %v1365, %v1362
  %v2227 = vpack.c.bf16 %v1373, %v1370
  %v2228 = vpack.c.bf16 %v1381, %v1378
  %v2229 = vpack.c.bf16 %v1389, %v1386
  %v2230 = vpack.c.bf16 %v1397, %v1394
  %v2231 = vpack.c.bf16 %v1405, %v1402
  %v2232 = vpack.c.bf16 %v1413, %v1410
  %v2233 = vpack.c.bf16 %v1421, %v1418
  %v2234 = vpack.c.bf16 %v1429, %v1426
  %v2235 = vpack.c.bf16 %v1437, %v1434
  %v2236 = vpack.c.bf16 %v1445, %v1442
  %v2237 = vpack.c.bf16 %v1453, %v1450
  %v2238 = vpack.c.bf16 %v1461, %v1458
  %v2239 = vpack.c.bf16 %v1469, %v1466
  %v2240 = vpack.c.bf16 %v1477, %v1474
  %v2241 = vpack.c.bf16 %v1485, %v1482
  %v2242 = vpack.c.bf16 %v1493, %v1490
  %v2243 = vpack.c.bf16 %v1501, %v1498
  %v2244 = vpack.c.bf16 %v1509, %v1506
  %v2245 = vpack.c.bf16 %v1517, %v1514
  %v2246 = vpack.c.bf16 %v1525, %v1522
  %v2247 = vpack.c.bf16 %v1533, %v1530
  %v2248 = vpack.c.bf16 %v1541, %v1538
  %v2313 = vunpack.c.l.b16 %v2185
  %v2314 = vunpack.c.h.b16 %v2185
  %v2315 = vunpack.c.l.b16 %v2186
  %v2316 = vunpack.c.h.b16 %v2186
  %v2317 = vunpack.c.l.b16 %v2187
  %v2318 = vunpack.c.h.b16 %v2187
  %v2319 = vunpack.c.l.b16 %v2188
  %v2320 = vunpack.c.h.b16 %v2188
  %v2321 = vunpack.c.l.b16 %v2189
  %v2322 = vunpack.c.h.b16 %v2189
  %v2323 = vunpack.c.l.b16 %v2190
  %v2324 = vunpack.c.h.b16 %v2190
  %v2325 = vunpack.c.l.b16 %v2191
  %v2326 = vunpack.c.h.b16 %v2191
  %v2327 = vunpack.c.l.b16 %v2192
  %v2328 = vunpack.c.h.b16 %v2192
  %v2329 = vunpack.c.l.b16 %v2193
  %v2330 = vunpack.c.h.b16 %v2193
  %v2331 = vunpack.c.l.b16 %v2194
  %v2332 = vunpack.c.h.b16 %v2194
  %v2333 = vunpack.c.l.b16 %v2195
  %v2334 = vunpack.c.h.b16 %v2195
  %v2335 = vunpack.c.l.b16 %v2196
  %v2336 = vunpack.c.h.b16 %v2196
  %v2337 = vunpack.c.l.b16 %v2197
  %v2338 = vunpack.c.h.b16 %v2197
  %v2339 = vunpack.c.l.b16 %v2198
  %v2340 = vunpack.c.h.b16 %v2198
  %v2341 = vunpack.c.l.b16 %v2199
  %v2342 = vunpack.c.h.b16 %v2199
  %v2343 = vunpack.c.l.b16 %v2200
  %v2344 = vunpack.c.h.b16 %v2200
  %v2345 = vunpack.c.l.b16 %v2201
  %v2346 = vunpack.c.h.b16 %v2201
  %v2347 = vunpack.c.l.b16 %v2202
  %v2348 = vunpack.c.h.b16 %v2202
  %v2349 = vunpack.c.l.b16 %v2203
  %v2350 = vunpack.c.h.b16 %v2203
  %v2351 = vunpack.c.l.b16 %v2204
  %v2352 = vunpack.c.h.b16 %v2204
  %v2353 = vunpack.c.l.b16 %v2205
  %v2354 = vunpack.c.h.b16 %v2205
  %v2355 = vunpack.c.l.b16 %v2206
  %v2356 = vunpack.c.h.b16 %v2206
  %v2357 = vunpack.c.l.b16 %v2207
  %v2358 = vunpack.c.h.b16 %v2207
  %v2359 = vunpack.c.l.b16 %v2208
  %v2360 = vunpack.c.h.b16 %v2208
  %v2361 = vunpack.c.l.b16 %v2209
  %v2362 = vunpack.c.h.b16 %v2209
  %v2363 = vunpack.c.l.b16 %v2210
  %v2364 = vunpack.c.h.b16 %v2210
  %v2365 = vunpack.c.l.b16 %v2211
  %v2366 = vunpack.c.h.b16 %v2211
  %v2367 = vunpack.c.l.b16 %v2212
  %v2368 = vunpack.c.h.b16 %v2212
  %v2369 = vunpack.c.l.b16 %v2213
  %v2370 = vunpack.c.h.b16 %v2213
  %v2371 = vunpack.c.l.b16 %v2214
  %v2372 = vunpack.c.h.b16 %v2214
  %v2373 = vunpack.c.l.b16 %v2215
  %v2374 = vunpack.c.h.b16 %v2215
  %v2375 = vunpack.c.l.b16 %v2216
  %v2376 = vunpack.c.h.b16 %v2216
  %v2377 = vunpack.c.l.b16 %v2217
  %v2378 = vunpack.c.h.b16 %v2217
  %v2379 = vunpack.c.l.b16 %v2218
  %v2380 = vunpack.c.h.b16 %v2218
  %v2381 = vunpack.c.l.b16 %v2219
  %v2382 = vunpack.c.h.b16 %v2219
  %v2383 = vunpack.c.l.b16 %v2220
  %v2384 = vunpack.c.h.b16 %v2220
  %v2385 = vunpack.c.l.b16 %v2221
  %v2386 = vunpack.c.h.b16 %v2221
  %v2387 = vunpack.c.l.b16 %v2222
  %v2388 = vunpack.c.h.b16 %v2222
  %v2389 = vunpack.c.l.b16 %v2223
  %v2390 = vunpack.c.h.b16 %v2223
  %v2391 = vunpack.c.l.b16 %v2224
  %v2392 = vunpack.c.h.b16 %v2224
  %v2393 = vunpack.c.l.b16 %v2225
  %v2394 = vunpack.c.h.b16 %v2225
  %v2395 = vunpack.c.l.b16 %v2226
  %v2396 = vunpack.c.h.b16 %v2226
  %v2397 = vunpack.c.l.b16 %v2227
  %v2398 = vunpack.c.h.b16 %v2227
  %v2399 = vunpack.c.l.b16 %v2228
  %v2400 = vunpack.c.h.b16 %v2228
  %v2401 = vunpack.c.l.b16 %v2229
  %v2402 = vunpack.c.h.b16 %v2229
  %v2403 = vunpack.c.l.b16 %v2230
  %v2404 = vunpack.c.h.b16 %v2230
  %v2405 = vunpack.c.l.b16 %v2231
  %v2406 = vunpack.c.h.b16 %v2231
  %v2407 = vunpack.c.l.b16 %v2232
  %v2408 = vunpack.c.h.b16 %v2232
  %v2409 = vunpack.c.l.b16 %v2233
  %v2410 = vunpack.c.h.b16 %v2233
  %v2411 = vunpack.c.l.b16 %v2234
  %v2412 = vunpack.c.h.b16 %v2234
  %v2413 = vunpack.c.l.b16 %v2235
  %v2414 = vunpack.c.h.b16 %v2235
  %v2415 = vunpack.c.l.b16 %v2236
  %v2416 = vunpack.c.h.b16 %v2236
  %v2417 = vunpack.c.l.b16 %v2237
  %v2418 = vunpack.c.h.b16 %v2237
  %v2419 = vunpack.c.l.b16 %v2238
  %v2420 = vunpack.c.h.b16 %v2238
  %v2421 = vunpack.c.l.b16 %v2239
  %v2422 = vunpack.c.h.b16 %v2239
  %v2423 = vunpack.c.l.b16 %v2240
  %v2424 = vunpack.c.h.b16 %v2240
  %v2425 = vunpack.c.l.b16 %v2241
  %v2426 = vunpack.c.h.b16 %v2241
  %v2427 = vunpack.c.l.b16 %v2242
  %v2428 = vunpack.c.h.b16 %v2242
  %v2429 = vunpack.c.l.b16 %v2243
  %v2430 = vunpack.c.h.b16 %v2243
  %v2431 = vunpack.c.l.b16 %v2244
  %v2432 = vunpack.c.h.b16 %v2244
  %v2433 = vunpack.c.l.b16 %v2245
  %v2434 = vunpack.c.h.b16 %v2245
  %v2435 = vunpack.c.l.b16 %v2246
  %v2436 = vunpack.c.h.b16 %v2246
  %v2437 = vunpack.c.l.b16 %v2247
  %v2438 = vunpack.c.h.b16 %v2247
  %v2439 = vunpack.c.l.b16 %v2248
  %v2440 = vunpack.c.h.b16 %v2248
  %v2441 = vpack.c.b16 %v2313, %v2313
  %v2442 = vpack.c.b16 %v2314, %v2314
  %v2443 = vpack.c.b16 %v2315, %v2315
  %v2444 = vpack.c.b16 %v2316, %v2316
  %v2445 = vpack.c.b16 %v2317, %v2317
  %v2446 = vpack.c.b16 %v2318, %v2318
  %v2447 = vpack.c.b16 %v2319, %v2319
  %v2448 = vpack.c.b16 %v2320, %v2320
  %v2449 = vpack.c.b16 %v2321, %v2321
  %v2450 = vpack.c.b16 %v2322, %v2322
  %v2451 = vpack.c.b16 %v2323, %v2323
  %v2452 = vpack.c.b16 %v2324, %v2324
  %v2453 = vpack.c.b16 %v2325, %v2325
  %v2454 = vpack.c.b16 %v2326, %v2326
  %v2455 = vpack.c.b16 %v2327, %v2327
  %v2456 = vpack.c.b16 %v2328, %v2328
  %v2457 = vpack.c.b16 %v2329, %v2329
  %v2458 = vpack.c.b16 %v2330, %v2330
  %v2459 = vpack.c.b16 %v2331, %v2331
  %v2460 = vpack.c.b16 %v2332, %v2332
  %v2461 = vpack.c.b16 %v2333, %v2333
  %v2462 = vpack.c.b16 %v2334, %v2334
  %v2463 = vpack.c.b16 %v2335, %v2335
  %v2464 = vpack.c.b16 %v2336, %v2336
  %v2465 = vpack.c.b16 %v2337, %v2337
  %v2466 = vpack.c.b16 %v2338, %v2338
  %v2467 = vpack.c.b16 %v2339, %v2339
  %v2468 = vpack.c.b16 %v2340, %v2340
  %v2469 = vpack.c.b16 %v2341, %v2341
  %v2470 = vpack.c.b16 %v2342, %v2342
  %v2471 = vpack.c.b16 %v2343, %v2343
  %v2472 = vpack.c.b16 %v2344, %v2344
  %v2473 = vpack.c.b16 %v2345, %v2345
  %v2474 = vpack.c.b16 %v2346, %v2346
  %v2475 = vpack.c.b16 %v2347, %v2347
  %v2476 = vpack.c.b16 %v2348, %v2348
  %v2477 = vpack.c.b16 %v2349, %v2349
  %v2478 = vpack.c.b16 %v2350, %v2350
  %v2479 = vpack.c.b16 %v2351, %v2351
  %v2480 = vpack.c.b16 %v2352, %v2352
  %v2481 = vpack.c.b16 %v2353, %v2353
  %v2482 = vpack.c.b16 %v2354, %v2354
  %v2483 = vpack.c.b16 %v2355, %v2355
  %v2484 = vpack.c.b16 %v2356, %v2356
  %v2485 = vpack.c.b16 %v2357, %v2357
  %v2486 = vpack.c.b16 %v2358, %v2358
  %v2487 = vpack.c.b16 %v2359, %v2359
  %v2488 = vpack.c.b16 %v2360, %v2360
  %v2489 = vpack.c.b16 %v2361, %v2361
  %v2490 = vpack.c.b16 %v2362, %v2362
  %v2491 = vpack.c.b16 %v2363, %v2363
  %v2492 = vpack.c.b16 %v2364, %v2364
  %v2493 = vpack.c.b16 %v2365, %v2365
  %v2494 = vpack.c.b16 %v2366, %v2366
  %v2495 = vpack.c.b16 %v2367, %v2367
  %v2496 = vpack.c.b16 %v2368, %v2368
  %v2497 = vpack.c.b16 %v2369, %v2369
  %v2498 = vpack.c.b16 %v2370, %v2370
  %v2499 = vpack.c.b16 %v2371, %v2371
  %v2500 = vpack.c.b16 %v2372, %v2372
  %v2501 = vpack.c.b16 %v2373, %v2373
  %v2502 = vpack.c.b16 %v2374, %v2374
  %v2503 = vpack.c.b16 %v2375, %v2375
  %v2504 = vpack.c.b16 %v2376, %v2376
  %v2505 = vpack.c.b16 %v2377, %v2377
  %v2506 = vpack.c.b16 %v2378, %v2378
  %v2507 = vpack.c.b16 %v2379, %v2379
  %v2508 = vpack.c.b16 %v2380, %v2380
  %v2509 = vpack.c.b16 %v2381, %v2381
  %v2510 = vpack.c.b16 %v2382, %v2382
  %v2511 = vpack.c.b16 %v2383, %v2383
  %v2512 = vpack.c.b16 %v2384, %v2384
  %v2513 = vpack.c.b16 %v2385, %v2385
  %v2514 = vpack.c.b16 %v2386, %v2386
  %v2515 = vpack.c.b16 %v2387, %v2387
  %v2516 = vpack.c.b16 %v2388, %v2388
  %v2517 = vpack.c.b16 %v2389, %v2389
  %v2518 = vpack.c.b16 %v2390, %v2390
  %v2519 = vpack.c.b16 %v2391, %v2391
  %v2520 = vpack.c.b16 %v2392, %v2392
  %v2521 = vpack.c.b16 %v2393, %v2393
  %v2522 = vpack.c.b16 %v2394, %v2394
  %v2523 = vpack.c.b16 %v2395, %v2395
  %v2524 = vpack.c.b16 %v2396, %v2396
  %v2525 = vpack.c.b16 %v2397, %v2397
  %v2526 = vpack.c.b16 %v2398, %v2398
  %v2527 = vpack.c.b16 %v2399, %v2399
  %v2528 = vpack.c.b16 %v2400, %v2400
  %v2529 = vpack.c.b16 %v2401, %v2401
  %v2530 = vpack.c.b16 %v2402, %v2402
  %v2531 = vpack.c.b16 %v2403, %v2403
  %v2532 = vpack.c.b16 %v2404, %v2404
  %v2533 = vpack.c.b16 %v2405, %v2405
  %v2534 = vpack.c.b16 %v2406, %v2406
  %v2535 = vpack.c.b16 %v2407, %v2407
  %v2536 = vpack.c.b16 %v2408, %v2408
  %v2537 = vpack.c.b16 %v2409, %v2409
  %v2538 = vpack.c.b16 %v2410, %v2410
  %v2539 = vpack.c.b16 %v2411, %v2411
  %v2540 = vpack.c.b16 %v2412, %v2412
  %v2541 = vpack.c.b16 %v2413, %v2413
  %v2542 = vpack.c.b16 %v2414, %v2414
  %v2543 = vpack.c.b16 %v2415, %v2415
  %v2544 = vpack.c.b16 %v2416, %v2416
  %v2545 = vpack.c.b16 %v2417, %v2417
  %v2546 = vpack.c.b16 %v2418, %v2418
  %v2547 = vpack.c.b16 %v2419, %v2419
  %v2548 = vpack.c.b16 %v2420, %v2420
  %v2549 = vpack.c.b16 %v2421, %v2421
  %v2550 = vpack.c.b16 %v2422, %v2422
  %v2551 = vpack.c.b16 %v2423, %v2423
  %v2552 = vpack.c.b16 %v2424, %v2424
  %v2553 = vpack.c.b16 %v2425, %v2425
  %v2554 = vpack.c.b16 %v2426, %v2426
  %v2555 = vpack.c.b16 %v2427, %v2427
  %v2556 = vpack.c.b16 %v2428, %v2428
  %v2557 = vpack.c.b16 %v2429, %v2429
  %v2558 = vpack.c.b16 %v2430, %v2430
  %v2559 = vpack.c.b16 %v2431, %v2431
  %v2560 = vpack.c.b16 %v2432, %v2432
  %v2561 = vpack.c.b16 %v2433, %v2433
  %v2562 = vpack.c.b16 %v2434, %v2434
  %v2563 = vpack.c.b16 %v2435, %v2435
  %v2564 = vpack.c.b16 %v2436, %v2436
  %v2565 = vpack.c.b16 %v2437, %v2437
  %v2566 = vpack.c.b16 %v2438, %v2438
  %v2567 = vpack.c.b16 %v2439, %v2439
  %v2568 = vpack.c.b16 %v2440, %v2440
  %vm2697 = vcmask 519168
  %2698 = vst.msk [vmem:[%s6] sm:$0xf] %vm2697, %v2441
  %2699 = vst.msk [vmem:[%s6 + $0x4] sm:$0xf] %vm2697, %v2442
  %2700 = vst.msk [vmem:[%s6 + $0x8] sm:$0xf] %vm2697, %v2443
  %2701 = vst.msk [vmem:[%s6 + $0xc] sm:$0xf] %vm2697, %v2444
  %2702 = vst.msk [vmem:[%s6 + $0x10] sm:$0xf] %vm2697, %v2445
  %2703 = vst.msk [vmem:[%s6 + $0x14] sm:$0xf] %vm2697, %v2446
  %2704 = vst.msk [vmem:[%s6 + $0x18] sm:$0xf] %vm2697, %v2447
  %2705 = vst.msk [vmem:[%s6 + $0x1c] sm:$0xf] %vm2697, %v2448
  %2706 = vst.msk [vmem:[%s6 + $0x20] sm:$0xf] %vm2697, %v2449
  %2707 = vst.msk [vmem:[%s6 + $0x24] sm:$0xf] %vm2697, %v2450
  %2708 = vst.msk [vmem:[%s6 + $0x28] sm:$0xf] %vm2697, %v2451
  %2709 = vst.msk [vmem:[%s6 + $0x2c] sm:$0xf] %vm2697, %v2452
  %2710 = vst.msk [vmem:[%s6 + $0x30] sm:$0xf] %vm2697, %v2453
  %2711 = vst.msk [vmem:[%s6 + $0x34] sm:$0xf] %vm2697, %v2454
  %2712 = vst.msk [vmem:[%s6 + $0x38] sm:$0xf] %vm2697, %v2455
  %2713 = vst.msk [vmem:[%s6 + $0x3c] sm:$0xf] %vm2697, %v2456
  %2714 = vst.msk [vmem:[%s6 + $0x40] sm:$0xf] %vm2697, %v2457
  %2715 = vst.msk [vmem:[%s6 + $0x44] sm:$0xf] %vm2697, %v2458
  %2716 = vst.msk [vmem:[%s6 + $0x48] sm:$0xf] %vm2697, %v2459
  %2717 = vst.msk [vmem:[%s6 + $0x4c] sm:$0xf] %vm2697, %v2460
  %2718 = vst.msk [vmem:[%s6 + $0x50] sm:$0xf] %vm2697, %v2461
  %2719 = vst.msk [vmem:[%s6 + $0x54] sm:$0xf] %vm2697, %v2462
  %2720 = vst.msk [vmem:[%s6 + $0x58] sm:$0xf] %vm2697, %v2463
  %2721 = vst.msk [vmem:[%s6 + $0x5c] sm:$0xf] %vm2697, %v2464
  %2722 = vst.msk [vmem:[%s6 + $0x60] sm:$0xf] %vm2697, %v2465
  %2723 = vst.msk [vmem:[%s6 + $0x64] sm:$0xf] %vm2697, %v2466
  %2724 = vst.msk [vmem:[%s6 + $0x68] sm:$0xf] %vm2697, %v2467
  %2725 = vst.msk [vmem:[%s6 + $0x6c] sm:$0xf] %vm2697, %v2468
  %2726 = vst.msk [vmem:[%s6 + $0x70] sm:$0xf] %vm2697, %v2469
  %2727 = vst.msk [vmem:[%s6 + $0x74] sm:$0xf] %vm2697, %v2470
  %2728 = vst.msk [vmem:[%s6 + $0x78] sm:$0xf] %vm2697, %v2471
  %2729 = vst.msk [vmem:[%s6 + $0x7c] sm:$0xf] %vm2697, %v2472
  %2730 = vst.msk [vmem:[%s6 + $0x80] sm:$0xf] %vm2697, %v2473
  %2731 = vst.msk [vmem:[%s6 + $0x84] sm:$0xf] %vm2697, %v2474
  %2732 = vst.msk [vmem:[%s6 + $0x88] sm:$0xf] %vm2697, %v2475
  %2733 = vst.msk [vmem:[%s6 + $0x8c] sm:$0xf] %vm2697, %v2476
  %2734 = vst.msk [vmem:[%s6 + $0x90] sm:$0xf] %vm2697, %v2477
  %2735 = vst.msk [vmem:[%s6 + $0x94] sm:$0xf] %vm2697, %v2478
  %2736 = vst.msk [vmem:[%s6 + $0x98] sm:$0xf] %vm2697, %v2479
  %2737 = vst.msk [vmem:[%s6 + $0x9c] sm:$0xf] %vm2697, %v2480
  %2738 = vst.msk [vmem:[%s6 + $0xa0] sm:$0xf] %vm2697, %v2481
  %2739 = vst.msk [vmem:[%s6 + $0xa4] sm:$0xf] %vm2697, %v2482
  %2740 = vst.msk [vmem:[%s6 + $0xa8] sm:$0xf] %vm2697, %v2483
  %2741 = vst.msk [vmem:[%s6 + $0xac] sm:$0xf] %vm2697, %v2484
  %2742 = vst.msk [vmem:[%s6 + $0xb0] sm:$0xf] %vm2697, %v2485
  %2743 = vst.msk [vmem:[%s6 + $0xb4] sm:$0xf] %vm2697, %v2486
  %2744 = vst.msk [vmem:[%s6 + $0xb8] sm:$0xf] %vm2697, %v2487
  %2745 = vst.msk [vmem:[%s6 + $0xbc] sm:$0xf] %vm2697, %v2488
  %2746 = vst.msk [vmem:[%s6 + $0xc0] sm:$0xf] %vm2697, %v2489
  %2747 = vst.msk [vmem:[%s6 + $0xc4] sm:$0xf] %vm2697, %v2490
  %2748 = vst.msk [vmem:[%s6 + $0xc8] sm:$0xf] %vm2697, %v2491
  %2749 = vst.msk [vmem:[%s6 + $0xcc] sm:$0xf] %vm2697, %v2492
  %2750 = vst.msk [vmem:[%s6 + $0xd0] sm:$0xf] %vm2697, %v2493
  %2751 = vst.msk [vmem:[%s6 + $0xd4] sm:$0xf] %vm2697, %v2494
  %2752 = vst.msk [vmem:[%s6 + $0xd8] sm:$0xf] %vm2697, %v2495
  %2753 = vst.msk [vmem:[%s6 + $0xdc] sm:$0xf] %vm2697, %v2496
  %2754 = vst.msk [vmem:[%s6 + $0xe0] sm:$0xf] %vm2697, %v2497
  %2755 = vst.msk [vmem:[%s6 + $0xe4] sm:$0xf] %vm2697, %v2498
  %2756 = vst.msk [vmem:[%s6 + $0xe8] sm:$0xf] %vm2697, %v2499
  %2757 = vst.msk [vmem:[%s6 + $0xec] sm:$0xf] %vm2697, %v2500
  %2758 = vst.msk [vmem:[%s6 + $0xf0] sm:$0xf] %vm2697, %v2501
  %2759 = vst.msk [vmem:[%s6 + $0xf4] sm:$0xf] %vm2697, %v2502
  %2760 = vst.msk [vmem:[%s6 + $0xf8] sm:$0xf] %vm2697, %v2503
  %2761 = vst.msk [vmem:[%s6 + $0xfc] sm:$0xf] %vm2697, %v2504
  %2762 = vst.msk [vmem:[%s6 + $0x100] sm:$0xf] %vm2697, %v2505
  %2763 = vst.msk [vmem:[%s6 + $0x104] sm:$0xf] %vm2697, %v2506
  %2764 = vst.msk [vmem:[%s6 + $0x108] sm:$0xf] %vm2697, %v2507
  %2765 = vst.msk [vmem:[%s6 + $0x10c] sm:$0xf] %vm2697, %v2508
  %2766 = vst.msk [vmem:[%s6 + $0x110] sm:$0xf] %vm2697, %v2509
  %2767 = vst.msk [vmem:[%s6 + $0x114] sm:$0xf] %vm2697, %v2510
  %2768 = vst.msk [vmem:[%s6 + $0x118] sm:$0xf] %vm2697, %v2511
  %2769 = vst.msk [vmem:[%s6 + $0x11c] sm:$0xf] %vm2697, %v2512
  %2770 = vst.msk [vmem:[%s6 + $0x120] sm:$0xf] %vm2697, %v2513
  %2771 = vst.msk [vmem:[%s6 + $0x124] sm:$0xf] %vm2697, %v2514
  %2772 = vst.msk [vmem:[%s6 + $0x128] sm:$0xf] %vm2697, %v2515
  %2773 = vst.msk [vmem:[%s6 + $0x12c] sm:$0xf] %vm2697, %v2516
  %2774 = vst.msk [vmem:[%s6 + $0x130] sm:$0xf] %vm2697, %v2517
  %2775 = vst.msk [vmem:[%s6 + $0x134] sm:$0xf] %vm2697, %v2518
  %2776 = vst.msk [vmem:[%s6 + $0x138] sm:$0xf] %vm2697, %v2519
  %2777 = vst.msk [vmem:[%s6 + $0x13c] sm:$0xf] %vm2697, %v2520
  %2778 = vst.msk [vmem:[%s6 + $0x140] sm:$0xf] %vm2697, %v2521
  %2779 = vst.msk [vmem:[%s6 + $0x144] sm:$0xf] %vm2697, %v2522
  %2780 = vst.msk [vmem:[%s6 + $0x148] sm:$0xf] %vm2697, %v2523
  %2781 = vst.msk [vmem:[%s6 + $0x14c] sm:$0xf] %vm2697, %v2524
  %2782 = vst.msk [vmem:[%s6 + $0x150] sm:$0xf] %vm2697, %v2525
  %2783 = vst.msk [vmem:[%s6 + $0x154] sm:$0xf] %vm2697, %v2526
  %2784 = vst.msk [vmem:[%s6 + $0x158] sm:$0xf] %vm2697, %v2527
  %2785 = vst.msk [vmem:[%s6 + $0x15c] sm:$0xf] %vm2697, %v2528
  %2786 = vst.msk [vmem:[%s6 + $0x160] sm:$0xf] %vm2697, %v2529
  %2787 = vst.msk [vmem:[%s6 + $0x164] sm:$0xf] %vm2697, %v2530
  %2788 = vst.msk [vmem:[%s6 + $0x168] sm:$0xf] %vm2697, %v2531
  %2789 = vst.msk [vmem:[%s6 + $0x16c] sm:$0xf] %vm2697, %v2532
  %2790 = vst.msk [vmem:[%s6 + $0x170] sm:$0xf] %vm2697, %v2533
  %2791 = vst.msk [vmem:[%s6 + $0x174] sm:$0xf] %vm2697, %v2534
  %2792 = vst.msk [vmem:[%s6 + $0x178] sm:$0xf] %vm2697, %v2535
  %2793 = vst.msk [vmem:[%s6 + $0x17c] sm:$0xf] %vm2697, %v2536
  %2794 = vst.msk [vmem:[%s6 + $0x180] sm:$0xf] %vm2697, %v2537
  %2795 = vst.msk [vmem:[%s6 + $0x184] sm:$0xf] %vm2697, %v2538
  %2796 = vst.msk [vmem:[%s6 + $0x188] sm:$0xf] %vm2697, %v2539
  %2797 = vst.msk [vmem:[%s6 + $0x18c] sm:$0xf] %vm2697, %v2540
  %2798 = vst.msk [vmem:[%s6 + $0x190] sm:$0xf] %vm2697, %v2541
  %2799 = vst.msk [vmem:[%s6 + $0x194] sm:$0xf] %vm2697, %v2542
  %2800 = vst.msk [vmem:[%s6 + $0x198] sm:$0xf] %vm2697, %v2543
  %2801 = vst.msk [vmem:[%s6 + $0x19c] sm:$0xf] %vm2697, %v2544
  %2802 = vst.msk [vmem:[%s6 + $0x1a0] sm:$0xf] %vm2697, %v2545
  %2803 = vst.msk [vmem:[%s6 + $0x1a4] sm:$0xf] %vm2697, %v2546
  %2804 = vst.msk [vmem:[%s6 + $0x1a8] sm:$0xf] %vm2697, %v2547
  %2805 = vst.msk [vmem:[%s6 + $0x1ac] sm:$0xf] %vm2697, %v2548
  %2806 = vst.msk [vmem:[%s6 + $0x1b0] sm:$0xf] %vm2697, %v2549
  %2807 = vst.msk [vmem:[%s6 + $0x1b4] sm:$0xf] %vm2697, %v2550
  %2808 = vst.msk [vmem:[%s6 + $0x1b8] sm:$0xf] %vm2697, %v2551
  %2809 = vst.msk [vmem:[%s6 + $0x1bc] sm:$0xf] %vm2697, %v2552
  %2810 = vst.msk [vmem:[%s6 + $0x1c0] sm:$0xf] %vm2697, %v2553
  %2811 = vst.msk [vmem:[%s6 + $0x1c4] sm:$0xf] %vm2697, %v2554
  %2812 = vst.msk [vmem:[%s6 + $0x1c8] sm:$0xf] %vm2697, %v2555
  %2813 = vst.msk [vmem:[%s6 + $0x1cc] sm:$0xf] %vm2697, %v2556
  %2814 = vst.msk [vmem:[%s6 + $0x1d0] sm:$0xf] %vm2697, %v2557
  %2815 = vst.msk [vmem:[%s6 + $0x1d4] sm:$0xf] %vm2697, %v2558
  %2816 = vst.msk [vmem:[%s6 + $0x1d8] sm:$0xf] %vm2697, %v2559
  %2817 = vst.msk [vmem:[%s6 + $0x1dc] sm:$0xf] %vm2697, %v2560
  %2818 = vst.msk [vmem:[%s6 + $0x1e0] sm:$0xf] %vm2697, %v2561
  %2819 = vst.msk [vmem:[%s6 + $0x1e4] sm:$0xf] %vm2697, %v2562
  %2820 = vst.msk [vmem:[%s6 + $0x1e8] sm:$0xf] %vm2697, %v2563
  %2821 = vst.msk [vmem:[%s6 + $0x1ec] sm:$0xf] %vm2697, %v2564
  %2822 = vst.msk [vmem:[%s6 + $0x1f0] sm:$0xf] %vm2697, %v2565
  %2823 = vst.msk [vmem:[%s6 + $0x1f4] sm:$0xf] %vm2697, %v2566
  %2824 = vst.msk [vmem:[%s6 + $0x1f8] sm:$0xf] %vm2697, %v2567
  %2825 = vst.msk [vmem:[%s6 + $0x1fc] sm:$0xf] %vm2697, %v2568
  // Predicated region
  $region22: #{tpu_custom_call.1} parent=0 // pred_check
    _
  $region23: #{tpu_custom_call.1} parent=0 // pred_check_branch
    %2827 = sbr.rel (0) target = $region25
  $region24: #{tpu_custom_call.1} parent=0 // pred_region
    _
  $region25: #{tpu_custom_call.1} parent=0 // pred_fallthru
    _
  // Predicated region
  $region26: #{tpu_custom_call.1} parent=0 // pred_check
    _
  $region27: #{tpu_custom_call.1} parent=0 // pred_check_branch
    %2829 = sbr.rel (0) target = $region29
  $region28: #{tpu_custom_call.1} parent=0 // pred_region
    _
  $region29: #{tpu_custom_call.1} parent=0 // pred_fallthru
    _
  // Predicated region
  $region30: #{tpu_custom_call.1} parent=0 // pred_check
    _
  $region31: #{tpu_custom_call.1} parent=0 // pred_check_branch
    %2831 = sbr.rel (0) target = $region33
  $region32: #{tpu_custom_call.1} parent=0 // pred_region
    _
  $region33: #{tpu_custom_call.1} parent=0 // pred_fallthru
    _
  // Predicated region
  $region34: #{tpu_custom_call.1} parent=0 // pred_check
    _
  $region35: #{tpu_custom_call.1} parent=0 // pred_check_branch
    %2833 = sbr.rel (0) target = $region37
  $region36: #{tpu_custom_call.1} parent=0 // pred_region
    _
  $region37: #{tpu_custom_call.1} parent=0 // pred_fallthru
    _

</llo_original>
